<compile_context>
chip_gen: v7x
topology: tpu7x:2x2x1
jax: 0.10.0
libtpu: 0.0.40
codegen_flags: <defaults>
</compile_context>

<pallas_src>
import functools

import jax
import jax.numpy as jnp
import numpy as np
from jax.experimental import pallas as pl
from jax.experimental.pallas import tpu as pltpu

EPS = 1e-5


# ---------------------------------------------------------------------------
# kernels (all refs are per-sample (channels, L) tiles; channels = sublanes,
# time = lanes)
# ---------------------------------------------------------------------------
def _accum_stats(s_ref, h):
    """Accumulate per-channel [sum | sum-of-squares] into a (C, 2) output block
    revisited across the (sequential, 'arbitrary') grid axis."""
    upd = jnp.concatenate([jnp.sum(h, axis=1, keepdims=True),
                           jnp.sum(h * h, axis=1, keepdims=True)], axis=1)

    @pl.when(pl.program_id(0) == 0)
    def _():
        s_ref[...] = jnp.zeros_like(s_ref)

    s_ref[...] += upd


def _stats_kernel(x_ref, s_ref):
    _accum_stats(s_ref, x_ref[...])


def _bn_conv1_kernel(x_ref, inv_ref, shift_ref, w_ref, h_ref, s_ref, *, cdt):
    # fused BN (training stats) + ReLU + 1x1 conv, and stats of the result
    y = jnp.maximum(x_ref[...] * inv_ref[...] + shift_ref[...], 0.0)      # (C, L)
    h = jnp.dot(w_ref[...], y.astype(cdt),
                preferred_element_type=jnp.float32)                       # (P, L)
    h_ref[...] = h.astype(h_ref.dtype)
    _accum_stats(s_ref, h)


def _bn_conv3_kernel(h1_ref, inv_ref, shift_ref, wm_ref, wz_ref, wp_ref,
                     h2_ref, s_ref, *, cdt):
    # fused BN + ReLU + Conv1d(k=3, padding=1).  Three matmuls (one per tap);
    # the +/-1 taps are shifted by one lane with an explicit zero column —
    # the tile is a whole sample, so this realizes the conv's zero padding.
    y = jnp.maximum(h1_ref[...].astype(jnp.float32) * inv_ref[...]
                    + shift_ref[...], 0.0)                                 # (P, L)
    yc = y.astype(cdt)
    um = jnp.dot(wm_ref[...], yc, preferred_element_type=jnp.float32)     # tap @ t-1
    uz = jnp.dot(wz_ref[...], yc, preferred_element_type=jnp.float32)     # tap @ t
    up = jnp.dot(wp_ref[...], yc, preferred_element_type=jnp.float32)     # tap @ t+1
    P, L = um.shape
    zcol = jnp.zeros((P, 1), jnp.float32)
    prev = jnp.concatenate([zcol, um[:, :L - 1]], axis=1)   # y2[t-1] contribution
    nxt = jnp.concatenate([up[:, 1:], zcol], axis=1)        # y2[t+1] contribution
    h2 = prev + uz + nxt
    h2_ref[...] = h2.astype(h2_ref.dtype)
    _accum_stats(s_ref, h2)


def _bn_conv1_residual_kernel(x_ref, h2_ref, inv_ref, shift_ref, w_ref, cb_ref,
                              o_ref, *, cdt):
    y = jnp.maximum(h2_ref[...].astype(jnp.float32) * inv_ref[...]
                    + shift_ref[...], 0.0)                                 # (P, L)
    h3 = jnp.dot(w_ref[...], y.astype(cdt),
                 preferred_element_type=jnp.float32)                       # (C, L)
    o_ref[...] = x_ref[...] + h3 + cb_ref[...]


# ---------------------------------------------------------------------------
# helpers
# ---------------------------------------------------------------------------
def _bn_coeffs(stats, count, gamma, beta):
    """Fused BN-apply coefficients: y = h * inv + shift (per channel, (C,1))."""
    mean = stats[:, 0:1] / count
    var = jnp.maximum(stats[:, 1:2] / count - mean * mean, 0.0)
    inv = jax.lax.rsqrt(var + EPS) * gamma
    return inv, beta - mean * inv


# ---------------------------------------------------------------------------
# wrapper
# ---------------------------------------------------------------------------
def bottleneck1d(x_ncl, params, *, use_bf16=True):
    """x_ncl: (N, C, L) float32 — same convention as the PyTorch module."""
    N, C, L = x_ncl.shape
    P = params["w1"].shape[1]                 # planes = outplanes // 2
    assert params["w3"].shape[1] == C         # residual needs inplanes == outplanes
    f32 = jnp.float32
    cdt = jnp.bfloat16 if use_bf16 else f32   # matmul operand dtype
    idt = jnp.bfloat16 if use_bf16 else f32   # intermediate (h1/h2) storage dtype

    # ---- parameters: weights transposed to (out, in) so kernels do W @ y ----
    w1t = jnp.asarray(params["w1"], f32).T.astype(cdt)        # (P, C)
    w2mt = jnp.asarray(params["w2m"], f32).T.astype(cdt)      # (P, P)
    w2zt = jnp.asarray(params["w2z"], f32).T.astype(cdt)      # (P, P)
    w2pt = jnp.asarray(params["w2p"], f32).T.astype(cdt)      # (P, P)
    w3t = jnp.asarray(params["w3"], f32).T.astype(cdt)        # (C, P)

    col = lambda v: jnp.asarray(v, f32).reshape(-1, 1)        # per-channel column
    g1, b1 = col(params["g1"]), col(params["b1"])
    g2, b2 = col(params["g2"]), col(params["b2"])
    g3, b3 = col(params["g3"]), col(params["b3"])
    cb3 = col(params["cb3"])
    # cb1 / cb2 intentionally dropped: exactly cancelled by the following
    # training-mode BatchNorm's mean subtraction.

    x = x_ncl.astype(f32)
    count = float(N * L)
    grid = (N,)                               # one whole sample per grid step

    try:
        vmem_cap = int(pltpu.get_tpu_info().vmem_capacity_bytes)
    except Exception:                          # conservative fallback
        vmem_cap = 64 * 1024 * 1024
    vlimit = int(min(0.9 * vmem_cap, 128 * 1024 * 1024))
    cp_arb = pltpu.CompilerParams(dimension_semantics=("arbitrary",),
                                  vmem_limit_bytes=vlimit)
    cp_par = pltpu.CompilerParams(dimension_semantics=("parallel",),
                                  vmem_limit_bytes=vlimit)

    def samp_spec(ch):        # per-sample activation block, batch dim squeezed
        return pl.BlockSpec((None, ch, L), lambda i: (i, 0, 0))

    def const_spec(shape):    # weights / coeffs / stats: VMEM-resident across grid
        return pl.BlockSpec(shape, lambda i: (0,) * len(shape))

    # ---- stage 1: per-channel sum / sumsq of x ------------------------------
    stats1 = pl.pallas_call(
        _stats_kernel,
        grid=grid,
        in_specs=[samp_spec(C)],
        out_specs=const_spec((C, 2)),
        out_shape=jax.ShapeDtypeStruct((C, 2), f32),
        compiler_params=cp_arb,
    )(x)
    inv1, shift1 = _bn_coeffs(stats1, count, g1, b1)

    # ---- stage 2: BN1 + ReLU + Conv1x1 -> h1, stats of h1 -------------------
    h1, stats2 = pl.pallas_call(
        functools.partial(_bn_conv1_kernel, cdt=cdt),
        grid=grid,
        in_specs=[samp_spec(C), const_spec((C, 1)), const_spec((C, 1)),
                  const_spec((P, C))],
        out_specs=(samp_spec(P), const_spec((P, 2))),
        out_shape=(jax.ShapeDtypeStruct((N, P, L), idt),
                   jax.ShapeDtypeStruct((P, 2), f32)),
        compiler_params=cp_arb,
    )(x, inv1, shift1, w1t)
    inv2, shift2 = _bn_coeffs(stats2, count, g2, b2)

    # ---- stage 3: BN2 + ReLU + Conv(k=3, pad=1) -> h2, stats of h2 ----------
    h2, stats3 = pl.pallas_call(
        functools.partial(_bn_conv3_kernel, cdt=cdt),
        grid=grid,
        in_specs=[samp_spec(P), const_spec((P, 1)), const_spec((P, 1)),
                  const_spec((P, P)), const_spec((P, P)), const_spec((P, P))],
        out_specs=(samp_spec(P), const_spec((P, 2))),
        out_shape=(jax.ShapeDtypeStruct((N, P, L), idt),
                   jax.ShapeDtypeStruct((P, 2), f32)),
        compiler_params=cp_arb,
    )(h1, inv2, shift2, w2mt, w2zt, w2pt)
    inv3, shift3 = _bn_coeffs(stats3, count, g3, b3)

    # ---- stage 4: BN3 + ReLU + Conv1x1 + residual (aliases x's HBM buffer) --
    out = pl.pallas_call(
        functools.partial(_bn_conv1_residual_kernel, cdt=cdt),
        grid=grid,
        in_specs=[samp_spec(C), samp_spec(P), const_spec((P, 1)),
                  const_spec((P, 1)), const_spec((C, P)), const_spec((C, 1))],
        out_specs=samp_spec(C),
        out_shape=jax.ShapeDtypeStruct((N, C, L), f32),
        input_output_aliases={0: 0},
        compiler_params=cp_par,
    )(x, h2, inv3, shift3, w3t, cb3)

    return out


# ---------------------------------------------------------------------------
# pure-JAX reference (faithful to the PyTorch module, f32 everywhere)
# ---------------------------------------------------------------------------
def bottleneck1d_reference(x_ncl, p):
    x = jnp.transpose(x_ncl, (0, 2, 1))                       # (N, L, C)

    def bn_relu(h, g, b):
        mean = jnp.mean(h, axis=(0, 1), keepdims=True)
        var = jnp.mean((h - mean) ** 2, axis=(0, 1), keepdims=True)
        y = (h - mean) / jnp.sqrt(var + EPS) * g.reshape(1, 1, -1) + b.reshape(1, 1, -1)
        return jnp.maximum(y, 0.0)

    y1 = bn_relu(x, p["g1"], p["b1"])
    h1 = jnp.einsum("nlc,cp->nlp", y1, p["w1"]) + p["cb1"].reshape(1, 1, -1)
    y2 = bn_relu(h1, p["g2"], p["b2"])
    y2p = jnp.pad(y2, ((0, 0), (1, 1), (0, 0)))
    h2 = (jnp.einsum("nlc,cp->nlp", y2p[:, :-2], p["w2m"])
          + jnp.einsum("nlc,cp->nlp", y2p[:, 1:-1], p["w2z"])
          + jnp.einsum("nlc,cp->nlp", y2p[:, 2:], p["w2p"])
          + p["cb2"].reshape(1, 1, -1))
    y3 = bn_relu(h2, p["g3"], p["b3"])
    h3 = jnp.einsum("nlp,pc->nlc", y3, p["w3"]) + p["cb3"].reshape(1, 1, -1)
    return jnp.transpose(x + h3, (0, 2, 1))


def make_params(inplanes, outplanes):
    """Deterministic synthetic parameters (torch conv weight (out,in,k) stored transposed)."""
    planes = outplanes // 2
    ks = jax.random.split(jax.random.PRNGKey(42), 16)
    f32 = jnp.float32
    u = lambda k, n, lo, hi: jax.random.uniform(k, (n,), f32, lo, hi)
    g = lambda k, shape, s: s * jax.random.normal(k, shape, f32)
    return {
        "g1": u(ks[0], inplanes, 0.6, 1.4), "b1": u(ks[1], inplanes, -0.3, 0.3),
        "w1": g(ks[2], (inplanes, planes), 0.3), "cb1": u(ks[3], planes, -0.2, 0.2),
        "g2": u(ks[4], planes, 0.6, 1.4), "b2": u(ks[5], planes, -0.3, 0.3),
        "w2m": g(ks[6], (planes, planes), 0.3),
        "w2z": g(ks[7], (planes, planes), 0.3),
        "w2p": g(ks[8], (planes, planes), 0.3),
        "cb2": u(ks[9], planes, -0.2, 0.2),
        "g3": u(ks[10], planes, 0.6, 1.4), "b3": u(ks[11], planes, -0.3, 0.3),
        "w3": g(ks[12], (planes, outplanes), 0.3),
        "cb3": u(ks[13], outplanes, -0.2, 0.2),
    }


if __name__ == "__main__":
    # Residual add requires inplanes == outplanes.
    # Second config uses L=128 so every activation store is lane-dense.
    for (N, C, L) in [(2, 16, 24), (4, 96, 128)]:
        params = make_params(inplanes=C, outplanes=C)
        x = jax.random.normal(jax.random.PRNGKey(0), (N, C, L), jnp.float32)
        ref = np.asarray(jax.block_until_ready(bottleneck1d_reference(x, params)))

        # exact-math path (f32 matmuls, f32 intermediates); N>=2 grid steps
        # exercise the cross-step stats accumulators.
        f32_fn = jax.jit(functools.partial(bottleneck1d, use_bf16=False))
        out32 = jax.block_until_ready(f32_fn(x, params))
        np.testing.assert_allclose(np.asarray(out32), ref, rtol=1e-3, atol=1e-3)

        # performance path (bf16 MXU operands + bf16 intermediates, f32 accumulation).
        bf16_fn = jax.jit(functools.partial(bottleneck1d, use_bf16=True))
        outbf = jax.block_until_ready(bf16_fn(x, params))
        np.testing.assert_allclose(np.asarray(outbf), ref, rtol=5e-2, atol=1e-1)

        assert out32.shape == x.shape and out32.dtype == x.dtype

    print("KERNEL_OK")
</pallas_src>

<mosaic_0001>
module attributes {stable_mosaic.version = 11 : i64} {
  func.func @_stats_kernel(%arg0: i32, %arg1: memref<1x16x24xf32, #tpu.memory_space<vmem>>, %arg2: memref<16x2xf32, #tpu.memory_space<vmem>>) attributes {dimension_semantics = [#tpu.dimension_semantics<arbitrary>], iteration_bounds = array<i64: 2>, scalar_prefetch = 0 : i64, scratch_operands = 0 : i64, tpu.core_type = #tpu.core_type<tc>, window_params = [{transform_indices = @transform_0, window_bounds = array<i64: 1, 16, 24>}, {pipeline_mode = #tpu.pipeline_mode<synchronous>, transform_indices = @transform_1, window_bounds = array<i64: 16, 2>}]} {
    %c0 = arith.constant 0 : index
    %c0_0 = arith.constant 0 : index
    %c0_1 = arith.constant 0 : index
    %0 = vector.load %arg1[%c0, %c0_0, %c0_1] : memref<1x16x24xf32, #tpu.memory_space<vmem>>, vector<1x16x24xf32>
    %1 = vector.shape_cast %0 : vector<1x16x24xf32> to vector<16x24xf32>
    %cst = arith.constant dense<0.000000e+00> : vector<16xf32>
    %2 = vector.multi_reduction <add>, %1, %cst [1] : vector<16x24xf32> to vector<16xf32>
    %3 = vector.shape_cast %2 : vector<16xf32> to vector<16x1xf32>
    %4 = arith.mulf %1, %1 : vector<16x24xf32>
    %cst_2 = arith.constant dense<0.000000e+00> : vector<16xf32>
    %5 = vector.multi_reduction <add>, %4, %cst_2 [1] : vector<16x24xf32> to vector<16xf32>
    %6 = vector.shape_cast %5 : vector<16xf32> to vector<16x1xf32>
    %7 = tpu.concatenate %3, %6 in 1 : vector<16x1xf32>, vector<16x1xf32> -> vector<16x2xf32>
    %c0_i32 = arith.constant 0 : i32
    %8 = arith.cmpi eq, %arg0, %c0_i32 : i32
    %9 = arith.extui %8 : i1 to i32
    %c0_i32_3 = arith.constant 0 : i32
    %10 = arith.cmpi ne, %9, %c0_i32_3 : i32
    scf.if %10 {
      %cst_8 = arith.constant 0.000000e+00 : f32
      %14 = vector.broadcast %cst_8 : f32 to vector<16x2xf32>
      %c0_9 = arith.constant 0 : index
      %c0_10 = arith.constant 0 : index
      %15 = vector.load %arg2[%c0_9, %c0_10] : memref<16x2xf32, #tpu.memory_space<vmem>>, vector<16x2xf32>
      tpu.vector_store %arg2[%c0_9, %c0_10], %14 {strides = array<i32>} : memref<16x2xf32, #tpu.memory_space<vmem>>, vector<16x2xf32>,
    } else {
    }
    %c0_4 = arith.constant 0 : index
    %c0_5 = arith.constant 0 : index
    %11 = vector.load %arg2[%c0_4, %c0_5] : memref<16x2xf32, #tpu.memory_space<vmem>>, vector<16x2xf32>
    %12 = arith.addf %11, %7 : vector<16x2xf32>
    %c0_6 = arith.constant 0 : index
    %c0_7 = arith.constant 0 : index
    %13 = vector.load %arg2[%c0_6, %c0_7] : memref<16x2xf32, #tpu.memory_space<vmem>>, vector<16x2xf32>
    tpu.vector_store %arg2[%c0_6, %c0_7], %12 {strides = array<i32>} : memref<16x2xf32, #tpu.memory_space<vmem>>, vector<16x2xf32>,
    return
  }
  func.func @transform_0(%arg0: i32) -> (i32, i32, i32) {
    %c0_i32 = arith.constant 0 : i32
    %c0_i32_0 = arith.constant 0 : i32
    %c0_i32_1 = arith.constant 0 : i32
    return %arg0, %c0_i32, %c0_i32_0 : i32, i32, i32
  }
  func.func @transform_1(%arg0: i32) -> (i32, i32) {
    %c0_i32 = arith.constant 0 : i32
    %c0_i32_0 = arith.constant 0 : i32
    %c0_i32_1 = arith.constant 0 : i32
    return %c0_i32, %c0_i32_0 : i32, i32
  }
}

module attributes {stable_mosaic.version = 11 : i64} {
  func.func @_bn_conv3_kernel(%arg0: i32, %arg1: memref<1x8x24xf32, #tpu.memory_space<vmem>>, %arg2: memref<8x1xf32, #tpu.memory_space<vmem>>, %arg3: memref<8x1xf32, #tpu.memory_space<vmem>>, %arg4: memref<8x8xf32, #tpu.memory_space<vmem>>, %arg5: memref<8x8xf32, #tpu.memory_space<vmem>>, %arg6: memref<8x8xf32, #tpu.memory_space<vmem>>, %arg7: memref<1x8x24xf32, #tpu.memory_space<vmem>>, %arg8: memref<8x2xf32, #tpu.memory_space<vmem>>) attributes {dimension_semantics = [#tpu.dimension_semantics<arbitrary>], iteration_bounds = array<i64: 2>, scalar_prefetch = 0 : i64, scratch_operands = 0 : i64, tpu.core_type = #tpu.core_type<tc>, window_params = [{transform_indices = @transform_0, window_bounds = array<i64: 1, 8, 24>}, {pipeline_mode = #tpu.pipeline_mode<synchronous>, transform_indices = @transform_1, window_bounds = array<i64: 8, 1>}, {pipeline_mode = #tpu.pipeline_mode<synchronous>, transform_indices = @transform_2, window_bounds = array<i64: 8, 1>}, {pipeline_mode = #tpu.pipeline_mode<synchronous>, transform_indices = @transform_3, window_bounds = array<i64: 8, 8>}, {pipeline_mode = #tpu.pipeline_mode<synchronous>, transform_indices = @transform_4, window_bounds = array<i64: 8, 8>}, {pipeline_mode = #tpu.pipeline_mode<synchronous>, transform_indices = @transform_5, window_bounds = array<i64: 8, 8>}, {transform_indices = @transform_6, window_bounds = array<i64: 1, 8, 24>}, {pipeline_mode = #tpu.pipeline_mode<synchronous>, transform_indices = @transform_7, window_bounds = array<i64: 8, 2>}]} {
    %c0 = arith.constant 0 : index
    %c0_0 = arith.constant 0 : index
    %c0_1 = arith.constant 0 : index
    %0 = vector.load %arg1[%c0, %c0_0, %c0_1] : memref<1x8x24xf32, #tpu.memory_space<vmem>>, vector<1x8x24xf32>
    %1 = vector.shape_cast %0 : vector<1x8x24xf32> to vector<8x24xf32>
    %c0_2 = arith.constant 0 : index
    %c0_3 = arith.constant 0 : index
    %2 = vector.load %arg2[%c0_2, %c0_3] : memref<8x1xf32, #tpu.memory_space<vmem>>, vector<8x1xf32>
    %3 = vector.broadcast %2 : vector<8x1xf32> to vector<8x24xf32>
    %4 = arith.mulf %1, %3 : vector<8x24xf32>
    %c0_4 = arith.constant 0 : index
    %c0_5 = arith.constant 0 : index
    %5 = vector.load %arg3[%c0_4, %c0_5] : memref<8x1xf32, #tpu.memory_space<vmem>>, vector<8x1xf32>
    %6 = vector.broadcast %5 : vector<8x1xf32> to vector<8x24xf32>
    %7 = arith.addf %4, %6 : vector<8x24xf32>
    %cst = arith.constant 0.000000e+00 : f32
    %8 = vector.broadcast %cst : f32 to vector<8x24xf32>
    %9 = arith.maximumf %7, %8 : vector<8x24xf32>
    %c0_6 = arith.constant 0 : index
    %c0_7 = arith.constant 0 : index
    %10 = vector.load %arg4[%c0_6, %c0_7] : memref<8x8xf32, #tpu.memory_space<vmem>>, vector<8x8xf32>
    %cst_8 = arith.constant dense<0.000000e+00> : vector<8x24xf32>
    %11 = tpu.matmul %10, %9, %cst_8 {dimension_numbers = #tpu.dot_dimension_numbers<[1], [0], [0], [1], [0, 0, 1, 1], [], []>} : vector<8x8xf32>, vector<8x24xf32>, vector<8x24xf32> -> vector<8x24xf32>
    %c0_9 = arith.constant 0 : index
    %c0_10 = arith.constant 0 : index
    %12 = vector.load %arg5[%c0_9, %c0_10] : memref<8x8xf32, #tpu.memory_space<vmem>>, vector<8x8xf32>
    %cst_11 = arith.constant dense<0.000000e+00> : vector<8x24xf32>
    %13 = tpu.matmul %12, %9, %cst_11 {dimension_numbers = #tpu.dot_dimension_numbers<[1], [0], [0], [1], [0, 0, 1, 1], [], []>} : vector<8x8xf32>, vector<8x24xf32>, vector<8x24xf32> -> vector<8x24xf32>
    %c0_12 = arith.constant 0 : index
    %c0_13 = arith.constant 0 : index
    %14 = vector.load %arg6[%c0_12, %c0_13] : memref<8x8xf32, #tpu.memory_space<vmem>>, vector<8x8xf32>
    %cst_14 = arith.constant dense<0.000000e+00> : vector<8x24xf32>
    %15 = tpu.matmul %14, %9, %cst_14 {dimension_numbers = #tpu.dot_dimension_numbers<[1], [0], [0], [1], [0, 0, 1, 1], [], []>} : vector<8x8xf32>, vector<8x24xf32>, vector<8x24xf32> -> vector<8x24xf32>
    %cst_15 = arith.constant 0.000000e+00 : f32
    %16 = vector.broadcast %cst_15 : f32 to vector<8x1xf32>
    %17 = vector.extract_strided_slice %11 {offsets = [0, 0], sizes = [8, 23], strides = [1, 1]} : vector<8x24xf32> to vector<8x23xf32>
    %18 = tpu.concatenate %16, %17 in 1 : vector<8x1xf32>, vector<8x23xf32> -> vector<8x24xf32>
    %19 = vector.extract_strided_slice %15 {offsets = [0, 1], sizes = [8, 23], strides = [1, 1]} : vector<8x24xf32> to vector<8x23xf32>
    %20 = tpu.concatenate %19, %16 in 1 : vector<8x23xf32>, vector<8x1xf32> -> vector<8x24xf32>
    %21 = arith.addf %18, %13 : vector<8x24xf32>
    %22 = arith.addf %21, %20 : vector<8x24xf32>
    %c0_16 = arith.constant 0 : index
    %c0_17 = arith.constant 0 : index
    %c0_18 = arith.constant 0 : index
    %23 = vector.load %arg7[%c0_16, %c0_17, %c0_18] : memref<1x8x24xf32, #tpu.memory_space<vmem>>, vector<1x8x24xf32>
    %24 = vector.shape_cast %23 : vector<1x8x24xf32> to vector<8x24xf32>
    %25 = vector.shape_cast %22 : vector<8x24xf32> to vector<1x8x24xf32>
    tpu.vector_store %arg7[%c0_16, %c0_17, %c0_18], %25 {strides = array<i32>} : memref<1x8x24xf32, #tpu.memory_space<vmem>>, vector<1x8x24xf32>,
    %cst_19 = arith.constant dense<0.000000e+00> : vector<8xf32>
    %26 = vector.multi_reduction <add>, %22, %cst_19 [1] : vector<8x24xf32> to vector<8xf32>
    %27 = vector.shape_cast %26 : vector<8xf32> to vector<8x1xf32>
    %28 = arith.mulf %22, %22 : vector<8x24xf32>
    %cst_20 = arith.constant dense<0.000000e+00> : vector<8xf32>
    %29 = vector.multi_reduction <add>, %28, %cst_20 [1] : vector<8x24xf32> to vector<8xf32>
    %30 = vector.shape_cast %29 : vector<8xf32> to vector<8x1xf32>
    %31 = tpu.concatenate %27, %30 in 1 : vector<8x1xf32>, vector<8x1xf32> -> vector<8x2xf32>
    %c0_i32 = arith.constant 0 : i32
    %32 = arith.cmpi eq, %arg0, %c0_i32 : i32
    %33 = arith.extui %32 : i1 to i32
    %c0_i32_21 = arith.constant 0 : i32
    %34 = arith.cmpi ne, %33, %c0_i32_21 : i32
    scf.if %34 {
      %cst_26 = arith.constant 0.000000e+00 : f32
      %38 = vector.broadcast %cst_26 : f32 to vector<8x2xf32>
      %c0_27 = arith.constant 0 : index
      %c0_28 = arith.constant 0 : index
      %39 = vector.load %arg8[%c0_27, %c0_28] : memref<8x2xf32, #tpu.memory_space<vmem>>, vector<8x2xf32>
      tpu.vector_store %arg8[%c0_27, %c0_28], %38 {strides = array<i32>} : memref<8x2xf32, #tpu.memory_space<vmem>>, vector<8x2xf32>,
    } else {
    }
    %c0_22 = arith.constant 0 : index
    %c0_23 = arith.constant 0 : index
    %35 = vector.load %arg8[%c0_22, %c0_23] : memref<8x2xf32, #tpu.memory_space<vmem>>, vector<8x2xf32>
    %36 = arith.addf %35, %31 : vector<8x2xf32>
    %c0_24 = arith.constant 0 : index
    %c0_25 = arith.constant 0 : index
    %37 = vector.load %arg8[%c0_24, %c0_25] : memref<8x2xf32, #tpu.memory_space<vmem>>, vector<8x2xf32>
    tpu.vector_store %arg8[%c0_24, %c0_25], %36 {strides = array<i32>} : memref<8x2xf32, #tpu.memory_space<vmem>>, vector<8x2xf32>,
    return
  }
  func.func @transform_0(%arg0: i32) -> (i32, i32, i32) {
    %c0_i32 = arith.constant 0 : i32
    %c0_i32_0 = arith.constant 0 : i32
    %c0_i32_1 = arith.constant 0 : i32
    return %arg0, %c0_i32, %c0_i32_0 : i32, i32, i32
  }
  func.func @transform_1(%arg0: i32) -> (i32, i32) {
    %c0_i32 = arith.constant 0 : i32
    %c0_i32_0 = arith.constant 0 : i32
    %c0_i32_1 = arith.constant 0 : i32
    return %c0_i32, %c0_i32_0 : i32, i32
  }
  func.func @transform_2(%arg0: i32) -> (i32, i32) {
    %c0_i32 = arith.constant 0 : i32
    %c0_i32_0 = arith.constant 0 : i32
    %c0_i32_1 = arith.constant 0 : i32
    return %c0_i32, %c0_i32_0 : i32, i32
  }
  func.func @transform_3(%arg0: i32) -> (i32, i32) {
    %c0_i32 = arith.constant 0 : i32
    %c0_i32_0 = arith.constant 0 : i32
    %c0_i32_1 = arith.constant 0 : i32
    return %c0_i32, %c0_i32_0 : i32, i32
  }
  func.func @transform_4(%arg0: i32) -> (i32, i32) {
    %c0_i32 = arith.constant 0 : i32
    %c0_i32_0 = arith.constant 0 : i32
    %c0_i32_1 = arith.constant 0 : i32
    return %c0_i32, %c0_i32_0 : i32, i32
  }
  func.func @transform_5(%arg0: i32) -> (i32, i32) {
    %c0_i32 = arith.constant 0 : i32
    %c0_i32_0 = arith.constant 0 : i32
    %c0_i32_1 = arith.constant 0 : i32
    return %c0_i32, %c0_i32_0 : i32, i32
  }
  func.func @transform_6(%arg0: i32) -> (i32, i32, i32) {
    %c0_i32 = arith.constant 0 : i32
    %c0_i32_0 = arith.constant 0 : i32
    %c0_i32_1 = arith.constant 0 : i32
    return %arg0, %c0_i32, %c0_i32_0 : i32, i32, i32
  }
  func.func @transform_7(%arg0: i32) -> (i32, i32) {
    %c0_i32 = arith.constant 0 : i32
    %c0_i32_0 = arith.constant 0 : i32
    %c0_i32_1 = arith.constant 0 : i32
    return %c0_i32, %c0_i32_0 : i32, i32
  }
}

module attributes {stable_mosaic.version = 11 : i64} {
  func.func @_bn_conv1_kernel(%arg0: i32, %arg1: memref<1x16x24xf32, #tpu.memory_space<vmem>>, %arg2: memref<16x1xf32, #tpu.memory_space<vmem>>, %arg3: memref<16x1xf32, #tpu.memory_space<vmem>>, %arg4: memref<8x16xf32, #tpu.memory_space<vmem>>, %arg5: memref<1x8x24xf32, #tpu.memory_space<vmem>>, %arg6: memref<8x2xf32, #tpu.memory_space<vmem>>) attributes {dimension_semantics = [#tpu.dimension_semantics<arbitrary>], iteration_bounds = array<i64: 2>, scalar_prefetch = 0 : i64, scratch_operands = 0 : i64, tpu.core_type = #tpu.core_type<tc>, window_params = [{transform_indices = @transform_0, window_bounds = array<i64: 1, 16, 24>}, {pipeline_mode = #tpu.pipeline_mode<synchronous>, transform_indices = @transform_1, window_bounds = array<i64: 16, 1>}, {pipeline_mode = #tpu.pipeline_mode<synchronous>, transform_indices = @transform_2, window_bounds = array<i64: 16, 1>}, {pipeline_mode = #tpu.pipeline_mode<synchronous>, transform_indices = @transform_3, window_bounds = array<i64: 8, 16>}, {transform_indices = @transform_4, window_bounds = array<i64: 1, 8, 24>}, {pipeline_mode = #tpu.pipeline_mode<synchronous>, transform_indices = @transform_5, window_bounds = array<i64: 8, 2>}]} {
    %c0 = arith.constant 0 : index
    %c0_0 = arith.constant 0 : index
    %c0_1 = arith.constant 0 : index
    %0 = vector.load %arg1[%c0, %c0_0, %c0_1] : memref<1x16x24xf32, #tpu.memory_space<vmem>>, vector<1x16x24xf32>
    %1 = vector.shape_cast %0 : vector<1x16x24xf32> to vector<16x24xf32>
    %c0_2 = arith.constant 0 : index
    %c0_3 = arith.constant 0 : index
    %2 = vector.load %arg2[%c0_2, %c0_3] : memref<16x1xf32, #tpu.memory_space<vmem>>, vector<16x1xf32>
    %3 = vector.broadcast %2 : vector<16x1xf32> to vector<16x24xf32>
    %4 = arith.mulf %1, %3 : vector<16x24xf32>
    %c0_4 = arith.constant 0 : index
    %c0_5 = arith.constant 0 : index
    %5 = vector.load %arg3[%c0_4, %c0_5] : memref<16x1xf32, #tpu.memory_space<vmem>>, vector<16x1xf32>
    %6 = vector.broadcast %5 : vector<16x1xf32> to vector<16x24xf32>
    %7 = arith.addf %4, %6 : vector<16x24xf32>
    %cst = arith.constant 0.000000e+00 : f32
    %8 = vector.broadcast %cst : f32 to vector<16x24xf32>
    %9 = arith.maximumf %7, %8 : vector<16x24xf32>
    %c0_6 = arith.constant 0 : index
    %c0_7 = arith.constant 0 : index
    %10 = vector.load %arg4[%c0_6, %c0_7] : memref<8x16xf32, #tpu.memory_space<vmem>>, vector<8x16xf32>
    %cst_8 = arith.constant dense<0.000000e+00> : vector<8x24xf32>
    %11 = tpu.matmul %10, %9, %cst_8 {dimension_numbers = #tpu.dot_dimension_numbers<[1], [0], [0], [1], [0, 0, 1, 1], [], []>} : vector<8x16xf32>, vector<16x24xf32>, vector<8x24xf32> -> vector<8x24xf32>
    %c0_9 = arith.constant 0 : index
    %c0_10 = arith.constant 0 : index
    %c0_11 = arith.constant 0 : index
    %12 = vector.load %arg5[%c0_9, %c0_10, %c0_11] : memref<1x8x24xf32, #tpu.memory_space<vmem>>, vector<1x8x24xf32>
    %13 = vector.shape_cast %12 : vector<1x8x24xf32> to vector<8x24xf32>
    %14 = vector.shape_cast %11 : vector<8x24xf32> to vector<1x8x24xf32>
    tpu.vector_store %arg5[%c0_9, %c0_10, %c0_11], %14 {strides = array<i32>} : memref<1x8x24xf32, #tpu.memory_space<vmem>>, vector<1x8x24xf32>,
    %cst_12 = arith.constant dense<0.000000e+00> : vector<8xf32>
    %15 = vector.multi_reduction <add>, %11, %cst_12 [1] : vector<8x24xf32> to vector<8xf32>
    %16 = vector.shape_cast %15 : vector<8xf32> to vector<8x1xf32>
    %17 = arith.mulf %11, %11 : vector<8x24xf32>
    %cst_13 = arith.constant dense<0.000000e+00> : vector<8xf32>
    %18 = vector.multi_reduction <add>, %17, %cst_13 [1] : vector<8x24xf32> to vector<8xf32>
    %19 = vector.shape_cast %18 : vector<8xf32> to vector<8x1xf32>
    %20 = tpu.concatenate %16, %19 in 1 : vector<8x1xf32>, vector<8x1xf32> -> vector<8x2xf32>
    %c0_i32 = arith.constant 0 : i32
    %21 = arith.cmpi eq, %arg0, %c0_i32 : i32
    %22 = arith.extui %21 : i1 to i32
    %c0_i32_14 = arith.constant 0 : i32
    %23 = arith.cmpi ne, %22, %c0_i32_14 : i32
    scf.if %23 {
      %cst_19 = arith.constant 0.000000e+00 : f32
      %27 = vector.broadcast %cst_19 : f32 to vector<8x2xf32>
      %c0_20 = arith.constant 0 : index
      %c0_21 = arith.constant 0 : index
      %28 = vector.load %arg6[%c0_20, %c0_21] : memref<8x2xf32, #tpu.memory_space<vmem>>, vector<8x2xf32>
      tpu.vector_store %arg6[%c0_20, %c0_21], %27 {strides = array<i32>} : memref<8x2xf32, #tpu.memory_space<vmem>>, vector<8x2xf32>,
    } else {
    }
    %c0_15 = arith.constant 0 : index
    %c0_16 = arith.constant 0 : index
    %24 = vector.load %arg6[%c0_15, %c0_16] : memref<8x2xf32, #tpu.memory_space<vmem>>, vector<8x2xf32>
    %25 = arith.addf %24, %20 : vector<8x2xf32>
    %c0_17 = arith.constant 0 : index
    %c0_18 = arith.constant 0 : index
    %26 = vector.load %arg6[%c0_17, %c0_18] : memref<8x2xf32, #tpu.memory_space<vmem>>, vector<8x2xf32>
    tpu.vector_store %arg6[%c0_17, %c0_18], %25 {strides = array<i32>} : memref<8x2xf32, #tpu.memory_space<vmem>>, vector<8x2xf32>,
    return
  }
  func.func @transform_0(%arg0: i32) -> (i32, i32, i32) {
    %c0_i32 = arith.constant 0 : i32
    %c0_i32_0 = arith.constant 0 : i32
    %c0_i32_1 = arith.constant 0 : i32
    return %arg0, %c0_i32, %c0_i32_0 : i32, i32, i32
  }
  func.func @transform_1(%arg0: i32) -> (i32, i32) {
    %c0_i32 = arith.constant 0 : i32
    %c0_i32_0 = arith.constant 0 : i32
    %c0_i32_1 = arith.constant 0 : i32
    return %c0_i32, %c0_i32_0 : i32, i32
  }
  func.func @transform_2(%arg0: i32) -> (i32, i32) {
    %c0_i32 = arith.constant 0 : i32
    %c0_i32_0 = arith.constant 0 : i32
    %c0_i32_1 = arith.constant 0 : i32
    return %c0_i32, %c0_i32_0 : i32, i32
  }
  func.func @transform_3(%arg0: i32) -> (i32, i32) {
    %c0_i32 = arith.constant 0 : i32
    %c0_i32_0 = arith.constant 0 : i32
    %c0_i32_1 = arith.constant 0 : i32
    return %c0_i32, %c0_i32_0 : i32, i32
  }
  func.func @transform_4(%arg0: i32) -> (i32, i32, i32) {
    %c0_i32 = arith.constant 0 : i32
    %c0_i32_0 = arith.constant 0 : i32
    %c0_i32_1 = arith.constant 0 : i32
    return %arg0, %c0_i32, %c0_i32_0 : i32, i32, i32
  }
  func.func @transform_5(%arg0: i32) -> (i32, i32) {
    %c0_i32 = arith.constant 0 : i32
    %c0_i32_0 = arith.constant 0 : i32
    %c0_i32_1 = arith.constant 0 : i32
    return %c0_i32, %c0_i32_0 : i32, i32
  }
}

module attributes {stable_mosaic.version = 11 : i64} {
  func.func @_bn_conv1_residual_kernel(%arg0: i32, %arg1: memref<1x16x24xf32, #tpu.memory_space<vmem>>, %arg2: memref<1x8x24xf32, #tpu.memory_space<vmem>>, %arg3: memref<8x1xf32, #tpu.memory_space<vmem>>, %arg4: memref<8x1xf32, #tpu.memory_space<vmem>>, %arg5: memref<16x8xf32, #tpu.memory_space<vmem>>, %arg6: memref<16x1xf32, #tpu.memory_space<vmem>>, %arg7: memref<1x16x24xf32, #tpu.memory_space<vmem>>) attributes {dimension_semantics = [#tpu.dimension_semantics<parallel>], iteration_bounds = array<i64: 2>, scalar_prefetch = 0 : i64, scratch_operands = 0 : i64, tpu.core_type = #tpu.core_type<tc>, window_params = [{transform_indices = @transform_0, window_bounds = array<i64: 1, 16, 24>}, {transform_indices = @transform_1, window_bounds = array<i64: 1, 8, 24>}, {pipeline_mode = #tpu.pipeline_mode<synchronous>, transform_indices = @transform_2, window_bounds = array<i64: 8, 1>}, {pipeline_mode = #tpu.pipeline_mode<synchronous>, transform_indices = @transform_3, window_bounds = array<i64: 8, 1>}, {pipeline_mode = #tpu.pipeline_mode<synchronous>, transform_indices = @transform_4, window_bounds = array<i64: 16, 8>}, {pipeline_mode = #tpu.pipeline_mode<synchronous>, transform_indices = @transform_5, window_bounds = array<i64: 16, 1>}, {transform_indices = @transform_6, window_bounds = array<i64: 1, 16, 24>}]} {
    %c0 = arith.constant 0 : index
    %c0_0 = arith.constant 0 : index
    %c0_1 = arith.constant 0 : index
    %0 = vector.load %arg2[%c0, %c0_0, %c0_1] : memref<1x8x24xf32, #tpu.memory_space<vmem>>, vector<1x8x24xf32>
    %1 = vector.shape_cast %0 : vector<1x8x24xf32> to vector<8x24xf32>
    %c0_2 = arith.constant 0 : index
    %c0_3 = arith.constant 0 : index
    %2 = vector.load %arg3[%c0_2, %c0_3] : memref<8x1xf32, #tpu.memory_space<vmem>>, vector<8x1xf32>
    %3 = vector.broadcast %2 : vector<8x1xf32> to vector<8x24xf32>
    %4 = arith.mulf %1, %3 : vector<8x24xf32>
    %c0_4 = arith.constant 0 : index
    %c0_5 = arith.constant 0 : index
    %5 = vector.load %arg4[%c0_4, %c0_5] : memref<8x1xf32, #tpu.memory_space<vmem>>, vector<8x1xf32>
    %6 = vector.broadcast %5 : vector<8x1xf32> to vector<8x24xf32>
    %7 = arith.addf %4, %6 : vector<8x24xf32>
    %cst = arith.constant 0.000000e+00 : f32
    %8 = vector.broadcast %cst : f32 to vector<8x24xf32>
    %9 = arith.maximumf %7, %8 : vector<8x24xf32>
    %c0_6 = arith.constant 0 : index
    %c0_7 = arith.constant 0 : index
    %10 = vector.load %arg5[%c0_6, %c0_7] : memref<16x8xf32, #tpu.memory_space<vmem>>, vector<16x8xf32>
    %cst_8 = arith.constant dense<0.000000e+00> : vector<16x24xf32>
    %11 = tpu.matmul %10, %9, %cst_8 {dimension_numbers = #tpu.dot_dimension_numbers<[1], [0], [0], [1], [0, 0, 1, 1], [], []>} : vector<16x8xf32>, vector<8x24xf32>, vector<16x24xf32> -> vector<16x24xf32>
    %c0_9 = arith.constant 0 : index
    %c0_10 = arith.constant 0 : index
    %c0_11 = arith.constant 0 : index
    %12 = vector.load %arg1[%c0_9, %c0_10, %c0_11] : memref<1x16x24xf32, #tpu.memory_space<vmem>>, vector<1x16x24xf32>
    %13 = vector.shape_cast %12 : vector<1x16x24xf32> to vector<16x24xf32>
    %14 = arith.addf %13, %11 : vector<16x24xf32>
    %c0_12 = arith.constant 0 : index
    %c0_13 = arith.constant 0 : index
    %15 = vector.load %arg6[%c0_12, %c0_13] : memref<16x1xf32, #tpu.memory_space<vmem>>, vector<16x1xf32>
    %16 = vector.broadcast %15 : vector<16x1xf32> to vector<16x24xf32>
    %17 = arith.addf %14, %16 : vector<16x24xf32>
    %c0_14 = arith.constant 0 : index
    %c0_15 = arith.constant 0 : index
    %c0_16 = arith.constant 0 : index
    %18 = vector.load %arg7[%c0_14, %c0_15, %c0_16] : memref<1x16x24xf32, #tpu.memory_space<vmem>>, vector<1x16x24xf32>
    %19 = vector.shape_cast %18 : vector<1x16x24xf32> to vector<16x24xf32>
    %20 = vector.shape_cast %17 : vector<16x24xf32> to vector<1x16x24xf32>
    tpu.vector_store %arg7[%c0_14, %c0_15, %c0_16], %20 {strides = array<i32>} : memref<1x16x24xf32, #tpu.memory_space<vmem>>, vector<1x16x24xf32>,
    return
  }
  func.func @transform_0(%arg0: i32) -> (i32, i32, i32) {
    %c0_i32 = arith.constant 0 : i32
    %c0_i32_0 = arith.constant 0 : i32
    %c0_i32_1 = arith.constant 0 : i32
    return %arg0, %c0_i32, %c0_i32_0 : i32, i32, i32
  }
  func.func @transform_1(%arg0: i32) -> (i32, i32, i32) {
    %c0_i32 = arith.constant 0 : i32
    %c0_i32_0 = arith.constant 0 : i32
    %c0_i32_1 = arith.constant 0 : i32
    return %arg0, %c0_i32, %c0_i32_0 : i32, i32, i32
  }
  func.func @transform_2(%arg0: i32) -> (i32, i32) {
    %c0_i32 = arith.constant 0 : i32
    %c0_i32_0 = arith.constant 0 : i32
    %c0_i32_1 = arith.constant 0 : i32
    return %c0_i32, %c0_i32_0 : i32, i32
  }
  func.func @transform_3(%arg0: i32) -> (i32, i32) {
    %c0_i32 = arith.constant 0 : i32
    %c0_i32_0 = arith.constant 0 : i32
    %c0_i32_1 = arith.constant 0 : i32
    return %c0_i32, %c0_i32_0 : i32, i32
  }
  func.func @transform_4(%arg0: i32) -> (i32, i32) {
    %c0_i32 = arith.constant 0 : i32
    %c0_i32_0 = arith.constant 0 : i32
    %c0_i32_1 = arith.constant 0 : i32
    return %c0_i32, %c0_i32_0 : i32, i32
  }
  func.func @transform_5(%arg0: i32) -> (i32, i32) {
    %c0_i32 = arith.constant 0 : i32
    %c0_i32_0 = arith.constant 0 : i32
    %c0_i32_1 = arith.constant 0 : i32
    return %c0_i32, %c0_i32_0 : i32, i32
  }
  func.func @transform_6(%arg0: i32) -> (i32, i32, i32) {
    %c0_i32 = arith.constant 0 : i32
    %c0_i32_0 = arith.constant 0 : i32
    %c0_i32_1 = arith.constant 0 : i32
    return %arg0, %c0_i32, %c0_i32_0 : i32, i32, i32
  }
}

</mosaic_0001>

<llo_original>
// kernel: bottleneck1d.4
$region0: #{bottleneck1d.4}
  #allocation0 [shape = 'u32[]', space=smem, size = 0x4, offset = 0x4, fixed_abs, tag = 'smem constant byte address 0x4 - core index']
  #allocation1 [shape = 'u32[144,128]{1,0:T(1,128)}', space=vmem, size = 0x12000, scoped, tag = 'internal scratch']
  %s0 = inlined_call_operand.vmem [shape: f32[2,16,24], index: 0, kind: input, shape index: {}]
  %s1 = inlined_call_operand.vmem [shape: f32[16,2], index: 1, kind: output, shape index: {}]
  %s2 = sld [smem:[#allocation0]]
  $region41: #{bottleneck1d.4} parent=0
    _
  %s4 = ssub.s32 1, %s2
  %s5 = scalar_select 0, %s4, %s2
  loop: start=0, step=1, limit=4
  $region2: #{bottleneck1d.4} parent=0 // loop_pre_header
    _
  $region3: #{bottleneck1d.4} parent=0 // loop_header
    %s7 = sphi 0, %s11
    %p8 = scmp.ge.s32.totalorder %s7, 4
    %s17 = sphi 0, %s19
    %s20 = sphi 0, %s17
    %s21 = sphi 0, %s20
    %s37 = sphi 0, %s21
    %s41 = sphi 0, %s41
    %s43 = sphi 0, %s41
    %s44 = sphi 0, %s43
    %s58 = sphi 0, %s44
  $region4: #{bottleneck1d.4} parent=0 // loop_header_branch
    %10 = sbr.rel (%p8) target = $region8
  $region5: #{bottleneck1d.4} parent=0 // loop_body
    %s12 = ssub.s32 %s7, 1
    %s13 = ssub.s32 %s7, 2
    %s14 = sadd.s32 %s7, 1
    %s15 = ssub.s32 %s7, %s14
    %p16 = scmp.eq.s32.totalorder %s15, 0
    %s18 = sadd.s32 %s17, 1
    %s19 = scalar_select %p16, %s17, %s18
    %p22 = pneg %p16
    %p23 = scmp.eq.s32.totalorder %s7, 1
    %p24 = por %p22, %p23
    %p25 = scmp.ne.s32.totalorder %s17, %s20
    %p26 = scmp.eq.s32.totalorder %s7, 0
    %p27 = por %p25, %p26
    %p28 = scmp.ne.s32.totalorder %s17, %s20
    %p29 = scmp.eq.s32.totalorder %s12, 1
    %p30 = por %p28, %p29
    %p31 = scmp.ne.s32.totalorder %s20, %s21
    %p32 = scmp.eq.s32.totalorder %s12, 0
    %p33 = por %p31, %p32
    %p34 = scmp.ne.s32.totalorder %s20, %s21
    %p35 = scmp.eq.s32.totalorder %s13, 1
    %p36 = por %p34, %p35
    %p38 = scmp.ne.s32.totalorder %s21, %s37
    %p39 = scmp.eq.s32.totalorder %s13, 0
    %p40 = por %p38, %p39
    %s42 = sadd.s32 %s41, 1
    %p45 = scmp.eq.s32.totalorder %s7, 1
    %p46 = scmp.ne.s32.totalorder %s41, %s43
    %p47 = scmp.eq.s32.totalorder %s7, 0
    %p48 = por %p46, %p47
    %p49 = scmp.ne.s32.totalorder %s41, %s43
    %p50 = scmp.eq.s32.totalorder %s12, 1
    %p51 = por %p49, %p50
    %p52 = scmp.ne.s32.totalorder %s43, %s44
    %p53 = scmp.eq.s32.totalorder %s12, 0
    %p54 = por %p52, %p53
    %p55 = scmp.ne.s32.totalorder %s43, %s44
    %p56 = scmp.eq.s32.totalorder %s13, 1
    %p57 = por %p55, %p56
    %p59 = scmp.ne.s32.totalorder %s44, %s58
    %p60 = scmp.eq.s32.totalorder %s13, 0
    %p61 = por %p59, %p60
    %p62 = scmp.le.s32.totalorder 1, %s7
    %p63 = scmp.lt.s32.totalorder %s7, 3
    %p64 = pnand %p62, %p63
    %p65 = pneg %p64
    // Predicated region
    $region9: #{bottleneck1d.4} parent=5 // pred_check
      _
    $region10: #{bottleneck1d.4} parent=5 // pred_check_branch
      %67 = sbr.rel (%p64) target = $region12
    $region11: #{bottleneck1d.4} parent=5 // pred_region
      %s68 = ssub.s32 %s7, 1
    $region12: #{bottleneck1d.4} parent=5 // pred_fallthru
      _
    %p69 = scmp.lt.s32.totalorder %s7, 2
    // Predicated region
    $region13: #{bottleneck1d.4} parent=5 // pred_check
      %p70 = pneg %p69
    $region14: #{bottleneck1d.4} parent=5 // pred_check_branch
      %72 = sbr.rel (%p70) target = $region16
    $region15: #{bottleneck1d.4} parent=5 // pred_region
      // Predicated region
      $region17: #{bottleneck1d.4} parent=15 // pred_check
        %p73 = pneg %p27
      $region18: #{bottleneck1d.4} parent=15 // pred_check_branch
        %75 = sbr.rel (%p73) target = $region20
      $region19: #{bottleneck1d.4} parent=15 // pred_region
        %p76 = scmp.lt.s32.totalorder %s7, 1
        %s77 = scalar_select %p76, %s7, 1
        %s78 = smul.addr %s77, 2
        %s79 = smul.addr %s78, 8
        %s80 = scalar_lea.vmem %s0, %s79
      $region20: #{bottleneck1d.4} parent=15 // pred_fallthru
        _
    $region16: #{bottleneck1d.4} parent=5 // pred_fallthru
      _
    %p81 = scmp.le.s32.totalorder 1, %s7
    %p82 = scmp.lt.s32.totalorder %s7, 3
    %p83 = pnand %p81, %p82
    %p84 = pneg %p83
    // Predicated region
    $region21: #{bottleneck1d.4} parent=5 // pred_check
      _
    $region22: #{bottleneck1d.4} parent=5 // pred_check_branch
      %86 = sbr.rel (%p83) target = $region24
    $region23: #{bottleneck1d.4} parent=5 // pred_region
      %s87 = ssub.s32 %s7, 1
      %p88 = scmp.lt.s32.totalorder %s12, 1
      %s89 = scalar_select %p88, %s12, 1
      %s90 = smul.addr %s89, 2
      %s91 = smul.addr %s90, 8
      %s92 = scalar_lea.vmem %s0, %s91
      %p93 = pneg %p33
      %p94 = pneg %p30
      %p95 = pneg %p54
      %p96 = pneg %p51
      %p97 = scmp.lt.s32.totalorder %s12, 1
      %s98 = scalar_select %p97, %s12, 1
      %s99 = smul.addr %s98, 2
      %s100 = smul.addr %s99, 8
      %s101 = scalar_lea.vmem %s0, %s100
      %v102 = vld [vmem:[%s101] sm:$0xff]
      %v103 = vld [vmem:[%s101 + $0x8] sm:$0xff]
      %vm104 = vcmask 195584
      %v105 = vsel %vm104, %v102, 0.0
      %106 = vadd.xlane.f32.xlu0 %v105
      %v107 = vpop.xlane.xlu0 %106
      %v108 = vsel %vm104, %v103, 0.0
      %109 = vadd.xlane.f32.xlu0 %v108
      %v110 = vpop.xlane.xlu0 %109
      %v111 = vmul.f32 %v102, %v102
      %v112 = vmul.f32 %v103, %v103
      %v113 = vsel %vm104, %v111, 0.0
      %114 = vadd.xlane.f32.xlu0 %v113
      %v115 = vpop.xlane.xlu0 %114
      %v116 = vsel %vm104, %v112, 0.0
      %117 = vadd.xlane.f32.xlu0 %v116
      %v118 = vpop.xlane.xlu0 %117
      %vm119 = vcmask 7168
      %v120 = vsel %vm119, %v107, %v115
      %v121 = vsel %vm119, %v110, %v118
      %p122 = scmp.eq.s32.totalorder %s12, 0
      // Predicated region
      $region25: #{bottleneck1d.4} parent=23 // pred_check
        %p123 = pneg %p122
      $region26: #{bottleneck1d.4} parent=23 // pred_check_branch
        %125 = sbr.rel (%p123) target = $region28
      $region27: #{bottleneck1d.4} parent=23 // pred_region
        %vm126 = vcmask 15360
        %127 = vst.msk [vmem:[%s1] sm:$0xff] %vm126, 0.0
        %128 = vst.msk [vmem:[%s1 + $0x8] sm:$0xff] %vm126, 0.0
      $region28: #{bottleneck1d.4} parent=23 // pred_fallthru
        _
      %v129 = vld [vmem:[%s1] sm:$0xff]
      %v130 = vld [vmem:[%s1 + $0x8] sm:$0xff]
      %v131 = vadd.f32 %v129, %v120
      %v132 = vadd.f32 %v130, %v121
      %vm133 = vcmask 15360
      %134 = vst.msk [vmem:[%s1] sm:$0xff] %vm133, %v131
      %135 = vst.msk [vmem:[%s1 + $0x8] sm:$0xff] %vm133, %v132
      // Predicated region
      $region29: #{bottleneck1d.4} parent=23 // pred_check
        %p136 = pneg %p51
      $region30: #{bottleneck1d.4} parent=23 // pred_check_branch
        %138 = sbr.rel (%p136) target = $region32
      $region31: #{bottleneck1d.4} parent=23 // pred_region
        _
      $region32: #{bottleneck1d.4} parent=23 // pred_fallthru
        _
      // Predicated region
      $region33: #{bottleneck1d.4} parent=23 // pred_check
        %p139 = pneg %p51
      $region34: #{bottleneck1d.4} parent=23 // pred_check_branch
        %141 = sbr.rel (%p139) target = $region36
      $region35: #{bottleneck1d.4} parent=23 // pred_region
        _
      $region36: #{bottleneck1d.4} parent=23 // pred_fallthru
        _
    $region24: #{bottleneck1d.4} parent=5 // pred_fallthru
      _
    %p142 = scmp.le.s32.totalorder 2, %s7
    // Predicated region
    $region37: #{bottleneck1d.4} parent=5 // pred_check
      %p143 = pneg %p142
    $region38: #{bottleneck1d.4} parent=5 // pred_check_branch
      %145 = sbr.rel (%p143) target = $region40
    $region39: #{bottleneck1d.4} parent=5 // pred_region
      %s146 = ssub.s32 %s7, 2
    $region40: #{bottleneck1d.4} parent=5 // pred_fallthru
      _
  $region6: #{bottleneck1d.4} parent=0 // loop_footer
    %s11 = sadd.s32 1, %s7
  $region7: #{bottleneck1d.4} parent=0 // loop_footer_branch
    %6 = sbr.rel target = $region3
  $region8: #{bottleneck1d.4} parent=0 // loop_exit
    _

// kernel: bottleneck1d.6
$region0: #{bottleneck1d.6}
  #allocation0 [shape = 'u32[]', space=smem, size = 0x4, offset = 0x4, fixed_abs, tag = 'smem constant byte address 0x4 - core index']
  #allocation1 [shape = 'u32[144,128]{1,0:T(1,128)}', space=vmem, size = 0x12000, scoped, tag = 'internal scratch']
  %s0 = inlined_call_operand.vmem [shape: f32[2,8,24], index: 0, kind: input, shape index: {}]
  %s1 = inlined_call_operand.vmem [shape: f32[8,1], index: 1, kind: input, shape index: {}]
  %s2 = inlined_call_operand.vmem [shape: f32[8,1], index: 2, kind: input, shape index: {}]
  %s3 = inlined_call_operand.vmem [shape: f32[8,8], index: 3, kind: input, shape index: {}]
  %s4 = inlined_call_operand.vmem [shape: f32[8,8], index: 4, kind: input, shape index: {}]
  %s5 = inlined_call_operand.vmem [shape: f32[8,8], index: 5, kind: input, shape index: {}]
  %s6 = inlined_call_operand.vmem [shape: f32[2,8,24], index: 6, kind: output, shape index: {0}]
  %s7 = inlined_call_operand.vmem [shape: f32[8,2], index: 7, kind: output, shape index: {1}]
  %8 = xla_tuple %s6, %s7
  %s9 = sld [smem:[#allocation0]]
  $region69: #{bottleneck1d.6} parent=0
    _
  %s11 = ssub.s32 1, %s9
  %s12 = scalar_select 0, %s11, %s9
  loop: start=0, step=1, limit=4
  $region2: #{bottleneck1d.6} parent=0 // loop_pre_header
    _
  $region3: #{bottleneck1d.6} parent=0 // loop_header
    %s14 = sphi 0, %s18
    %p15 = scmp.ge.s32.totalorder %s14, 4
    %s24 = sphi 0, %s26
    %s27 = sphi 0, %s24
    %s28 = sphi 0, %s27
    %s44 = sphi 0, %s28
    %s48 = sphi 0, %s48
    %s50 = sphi 0, %s48
    %s51 = sphi 0, %s50
    %s65 = sphi 0, %s51
    %s69 = sphi 0, %s69
    %s71 = sphi 0, %s69
    %s72 = sphi 0, %s71
    %s86 = sphi 0, %s72
    %s90 = sphi 0, %s90
    %s92 = sphi 0, %s90
    %s93 = sphi 0, %s92
    %s107 = sphi 0, %s93
    %s111 = sphi 0, %s111
    %s113 = sphi 0, %s111
    %s114 = sphi 0, %s113
    %s128 = sphi 0, %s114
    %s132 = sphi 0, %s132
    %s134 = sphi 0, %s132
    %s135 = sphi 0, %s134
    %s149 = sphi 0, %s135
    %s155 = sphi 0, %s157
    %s158 = sphi 0, %s155
    %s159 = sphi 0, %s158
    %s175 = sphi 0, %s159
    %s179 = sphi 0, %s179
    %s181 = sphi 0, %s179
    %s182 = sphi 0, %s181
    %s196 = sphi 0, %s182
  $region4: #{bottleneck1d.6} parent=0 // loop_header_branch
    %17 = sbr.rel (%p15) target = $region8
  $region5: #{bottleneck1d.6} parent=0 // loop_body
    %s19 = ssub.s32 %s14, 1
    %s20 = ssub.s32 %s14, 2
    %s21 = sadd.s32 %s14, 1
    %s22 = ssub.s32 %s14, %s21
    %p23 = scmp.eq.s32.totalorder %s22, 0
    %s25 = sadd.s32 %s24, 1
    %s26 = scalar_select %p23, %s24, %s25
    %p29 = pneg %p23
    %p30 = scmp.eq.s32.totalorder %s14, 1
    %p31 = por %p29, %p30
    %p32 = scmp.ne.s32.totalorder %s24, %s27
    %p33 = scmp.eq.s32.totalorder %s14, 0
    %p34 = por %p32, %p33
    %p35 = scmp.ne.s32.totalorder %s24, %s27
    %p36 = scmp.eq.s32.totalorder %s19, 1
    %p37 = por %p35, %p36
    %p38 = scmp.ne.s32.totalorder %s27, %s28
    %p39 = scmp.eq.s32.totalorder %s19, 0
    %p40 = por %p38, %p39
    %p41 = scmp.ne.s32.totalorder %s27, %s28
    %p42 = scmp.eq.s32.totalorder %s20, 1
    %p43 = por %p41, %p42
    %p45 = scmp.ne.s32.totalorder %s28, %s44
    %p46 = scmp.eq.s32.totalorder %s20, 0
    %p47 = por %p45, %p46
    %s49 = sadd.s32 %s48, 1
    %p52 = scmp.eq.s32.totalorder %s14, 1
    %p53 = scmp.ne.s32.totalorder %s48, %s50
    %p54 = scmp.eq.s32.totalorder %s14, 0
    %p55 = por %p53, %p54
    %p56 = scmp.ne.s32.totalorder %s48, %s50
    %p57 = scmp.eq.s32.totalorder %s19, 1
    %p58 = por %p56, %p57
    %p59 = scmp.ne.s32.totalorder %s50, %s51
    %p60 = scmp.eq.s32.totalorder %s19, 0
    %p61 = por %p59, %p60
    %p62 = scmp.ne.s32.totalorder %s50, %s51
    %p63 = scmp.eq.s32.totalorder %s20, 1
    %p64 = por %p62, %p63
    %p66 = scmp.ne.s32.totalorder %s51, %s65
    %p67 = scmp.eq.s32.totalorder %s20, 0
    %p68 = por %p66, %p67
    %s70 = sadd.s32 %s69, 1
    %p73 = scmp.eq.s32.totalorder %s14, 1
    %p74 = scmp.ne.s32.totalorder %s69, %s71
    %p75 = scmp.eq.s32.totalorder %s14, 0
    %p76 = por %p74, %p75
    %p77 = scmp.ne.s32.totalorder %s69, %s71
    %p78 = scmp.eq.s32.totalorder %s19, 1
    %p79 = por %p77, %p78
    %p80 = scmp.ne.s32.totalorder %s71, %s72
    %p81 = scmp.eq.s32.totalorder %s19, 0
    %p82 = por %p80, %p81
    %p83 = scmp.ne.s32.totalorder %s71, %s72
    %p84 = scmp.eq.s32.totalorder %s20, 1
    %p85 = por %p83, %p84
    %p87 = scmp.ne.s32.totalorder %s72, %s86
    %p88 = scmp.eq.s32.totalorder %s20, 0
    %p89 = por %p87, %p88
    %s91 = sadd.s32 %s90, 1
    %p94 = scmp.eq.s32.totalorder %s14, 1
    %p95 = scmp.ne.s32.totalorder %s90, %s92
    %p96 = scmp.eq.s32.totalorder %s14, 0
    %p97 = por %p95, %p96
    %p98 = scmp.ne.s32.totalorder %s90, %s92
    %p99 = scmp.eq.s32.totalorder %s19, 1
    %p100 = por %p98, %p99
    %p101 = scmp.ne.s32.totalorder %s92, %s93
    %p102 = scmp.eq.s32.totalorder %s19, 0
    %p103 = por %p101, %p102
    %p104 = scmp.ne.s32.totalorder %s92, %s93
    %p105 = scmp.eq.s32.totalorder %s20, 1
    %p106 = por %p104, %p105
    %p108 = scmp.ne.s32.totalorder %s93, %s107
    %p109 = scmp.eq.s32.totalorder %s20, 0
    %p110 = por %p108, %p109
    %s112 = sadd.s32 %s111, 1
    %p115 = scmp.eq.s32.totalorder %s14, 1
    %p116 = scmp.ne.s32.totalorder %s111, %s113
    %p117 = scmp.eq.s32.totalorder %s14, 0
    %p118 = por %p116, %p117
    %p119 = scmp.ne.s32.totalorder %s111, %s113
    %p120 = scmp.eq.s32.totalorder %s19, 1
    %p121 = por %p119, %p120
    %p122 = scmp.ne.s32.totalorder %s113, %s114
    %p123 = scmp.eq.s32.totalorder %s19, 0
    %p124 = por %p122, %p123
    %p125 = scmp.ne.s32.totalorder %s113, %s114
    %p126 = scmp.eq.s32.totalorder %s20, 1
    %p127 = por %p125, %p126
    %p129 = scmp.ne.s32.totalorder %s114, %s128
    %p130 = scmp.eq.s32.totalorder %s20, 0
    %p131 = por %p129, %p130
    %s133 = sadd.s32 %s132, 1
    %p136 = scmp.eq.s32.totalorder %s14, 1
    %p137 = scmp.ne.s32.totalorder %s132, %s134
    %p138 = scmp.eq.s32.totalorder %s14, 0
    %p139 = por %p137, %p138
    %p140 = scmp.ne.s32.totalorder %s132, %s134
    %p141 = scmp.eq.s32.totalorder %s19, 1
    %p142 = por %p140, %p141
    %p143 = scmp.ne.s32.totalorder %s134, %s135
    %p144 = scmp.eq.s32.totalorder %s19, 0
    %p145 = por %p143, %p144
    %p146 = scmp.ne.s32.totalorder %s134, %s135
    %p147 = scmp.eq.s32.totalorder %s20, 1
    %p148 = por %p146, %p147
    %p150 = scmp.ne.s32.totalorder %s135, %s149
    %p151 = scmp.eq.s32.totalorder %s20, 0
    %p152 = por %p150, %p151
    %s153 = ssub.s32 %s14, %s21
    %p154 = scmp.eq.s32.totalorder %s153, 0
    %s156 = sadd.s32 %s155, 1
    %s157 = scalar_select %p154, %s155, %s156
    %p160 = pneg %p154
    %p161 = scmp.eq.s32.totalorder %s14, 1
    %p162 = por %p160, %p161
    %p163 = scmp.ne.s32.totalorder %s155, %s158
    %p164 = scmp.eq.s32.totalorder %s14, 0
    %p165 = por %p163, %p164
    %p166 = scmp.ne.s32.totalorder %s155, %s158
    %p167 = scmp.eq.s32.totalorder %s19, 1
    %p168 = por %p166, %p167
    %p169 = scmp.ne.s32.totalorder %s158, %s159
    %p170 = scmp.eq.s32.totalorder %s19, 0
    %p171 = por %p169, %p170
    %p172 = scmp.ne.s32.totalorder %s158, %s159
    %p173 = scmp.eq.s32.totalorder %s20, 1
    %p174 = por %p172, %p173
    %p176 = scmp.ne.s32.totalorder %s159, %s175
    %p177 = scmp.eq.s32.totalorder %s20, 0
    %p178 = por %p176, %p177
    %s180 = sadd.s32 %s179, 1
    %p183 = scmp.eq.s32.totalorder %s14, 1
    %p184 = scmp.ne.s32.totalorder %s179, %s181
    %p185 = scmp.eq.s32.totalorder %s14, 0
    %p186 = por %p184, %p185
    %p187 = scmp.ne.s32.totalorder %s179, %s181
    %p188 = scmp.eq.s32.totalorder %s19, 1
    %p189 = por %p187, %p188
    %p190 = scmp.ne.s32.totalorder %s181, %s182
    %p191 = scmp.eq.s32.totalorder %s19, 0
    %p192 = por %p190, %p191
    %p193 = scmp.ne.s32.totalorder %s181, %s182
    %p194 = scmp.eq.s32.totalorder %s20, 1
    %p195 = por %p193, %p194
    %p197 = scmp.ne.s32.totalorder %s182, %s196
    %p198 = scmp.eq.s32.totalorder %s20, 0
    %p199 = por %p197, %p198
    %p200 = scmp.le.s32.totalorder 1, %s14
    %p201 = scmp.lt.s32.totalorder %s14, 3
    %p202 = pnand %p200, %p201
    %p203 = pneg %p202
    // Predicated region
    $region9: #{bottleneck1d.6} parent=5 // pred_check
      _
    $region10: #{bottleneck1d.6} parent=5 // pred_check_branch
      %205 = sbr.rel (%p202) target = $region12
    $region11: #{bottleneck1d.6} parent=5 // pred_region
      %s206 = ssub.s32 %s14, 1
      // Predicated region
      $region13: #{bottleneck1d.6} parent=11 // pred_check
        %p207 = pneg %p61
      $region14: #{bottleneck1d.6} parent=11 // pred_check_branch
        %209 = sbr.rel (%p207) target = $region16
      $region15: #{bottleneck1d.6} parent=11 // pred_region
        _
      $region16: #{bottleneck1d.6} parent=11 // pred_fallthru
        _
      // Predicated region
      $region17: #{bottleneck1d.6} parent=11 // pred_check
        %p210 = pneg %p82
      $region18: #{bottleneck1d.6} parent=11 // pred_check_branch
        %212 = sbr.rel (%p210) target = $region20
      $region19: #{bottleneck1d.6} parent=11 // pred_region
        _
      $region20: #{bottleneck1d.6} parent=11 // pred_fallthru
        _
      // Predicated region
      $region21: #{bottleneck1d.6} parent=11 // pred_check
        %p213 = pneg %p103
      $region22: #{bottleneck1d.6} parent=11 // pred_check_branch
        %215 = sbr.rel (%p213) target = $region24
      $region23: #{bottleneck1d.6} parent=11 // pred_region
        _
      $region24: #{bottleneck1d.6} parent=11 // pred_fallthru
        _
      // Predicated region
      $region25: #{bottleneck1d.6} parent=11 // pred_check
        %p216 = pneg %p124
      $region26: #{bottleneck1d.6} parent=11 // pred_check_branch
        %218 = sbr.rel (%p216) target = $region28
      $region27: #{bottleneck1d.6} parent=11 // pred_region
        _
      $region28: #{bottleneck1d.6} parent=11 // pred_fallthru
        _
      // Predicated region
      $region29: #{bottleneck1d.6} parent=11 // pred_check
        %p219 = pneg %p145
      $region30: #{bottleneck1d.6} parent=11 // pred_check_branch
        %221 = sbr.rel (%p219) target = $region32
      $region31: #{bottleneck1d.6} parent=11 // pred_region
        _
      $region32: #{bottleneck1d.6} parent=11 // pred_fallthru
        _
    $region12: #{bottleneck1d.6} parent=5 // pred_fallthru
      _
    %p222 = scmp.lt.s32.totalorder %s14, 2
    // Predicated region
    $region33: #{bottleneck1d.6} parent=5 // pred_check
      %p223 = pneg %p222
    $region34: #{bottleneck1d.6} parent=5 // pred_check_branch
      %225 = sbr.rel (%p223) target = $region36
    $region35: #{bottleneck1d.6} parent=5 // pred_region
      // Predicated region
      $region37: #{bottleneck1d.6} parent=35 // pred_check
        %p226 = pneg %p34
      $region38: #{bottleneck1d.6} parent=35 // pred_check_branch
        %228 = sbr.rel (%p226) target = $region40
      $region39: #{bottleneck1d.6} parent=35 // pred_region
        %p229 = scmp.lt.s32.totalorder %s14, 1
        %s230 = scalar_select %p229, %s14, 1
        %s231 = smul.addr %s230, 8
        %s232 = scalar_lea.vmem %s0, %s231
      $region40: #{bottleneck1d.6} parent=35 // pred_fallthru
        _
    $region36: #{bottleneck1d.6} parent=5 // pred_fallthru
      _
    %p233 = scmp.le.s32.totalorder 1, %s14
    %p234 = scmp.lt.s32.totalorder %s14, 3
    %p235 = pnand %p233, %p234
    %p236 = pneg %p235
    // Predicated region
    $region41: #{bottleneck1d.6} parent=5 // pred_check
      _
    $region42: #{bottleneck1d.6} parent=5 // pred_check_branch
      %238 = sbr.rel (%p235) target = $region44
    $region43: #{bottleneck1d.6} parent=5 // pred_region
      %s239 = ssub.s32 %s14, 1
      %p240 = scmp.lt.s32.totalorder %s19, 1
      %s241 = scalar_select %p240, %s19, 1
      %s242 = smul.addr %s241, 8
      %s243 = scalar_lea.vmem %s0, %s242
      %p244 = pneg %p40
      %p245 = pneg %p37
      %p246 = pneg %p61
      %p247 = pneg %p58
      %p248 = pneg %p82
      %p249 = pneg %p79
      %p250 = pneg %p103
      %p251 = pneg %p100
      %p252 = pneg %p124
      %p253 = pneg %p121
      %p254 = pneg %p145
      %p255 = pneg %p142
      %p256 = pneg %p171
      %p257 = pneg %p168
      %p258 = scmp.lt.s32.totalorder %s19, 1
      %s259 = scalar_select %p258, %s19, 1
      %s260 = smul.addr %s259, 8
      %s261 = scalar_lea.vmem %s6, %s260
      %p262 = pneg %p192
      %p263 = pneg %p189
      %p264 = scmp.lt.s32.totalorder %s19, 1
      %s265 = scalar_select %p264, %s19, 1
      %s266 = smul.addr %s265, 8
      %s267 = scalar_lea.vmem %s0, %s266
      %p268 = scmp.lt.s32.totalorder %s19, 1
      %s269 = scalar_select %p268, %s19, 1
      %s270 = smul.addr %s269, 8
      %s271 = scalar_lea.vmem %s6, %s270
      %v272 = vld [vmem:[%s267] sm:$0xff]
      %v273 = vld [vmem:[%s1] sm:$0xff]
      %275 = vset.pattern.permute.xlu0 0
      %276 = vperm.xlu0 %275, %v273
      %v277 = vpop.permute.xlu0 %276
      %v279 = vmul.f32 %v272, %v277
      %v280 = vld [vmem:[%s2] sm:$0xff]
      %282 = vset.pattern.permute.xlu0 0
      %283 = vperm.xlu0 %282, %v280
      %v284 = vpop.permute.xlu0 %283
      %v286 = vadd.f32 %v279, %v284
      %v287 = vmax.f32 %v286, 0.0
      %v288 = vld [vmem:[%s3] sm:$0xff]
      %vm289 = vcmask 64512
      %v291 = vsel %vm289, %v288, 0
      %293 = vmatprep.subr.mxu0 0.0
      %294 = vmatpush1.msra.mxu0 %v287
      %295 = vmatprep.subr.mxu0 0.0
      %296 = vmatpush1.msra.mxu0 0.0
      %297 = vmatprep.subr.mxu0 0.0
      %298 = vmatpush1.msra.mxu0 0.0
      %299 = vmatprep.subr.mxu0 0.0
      %300 = vmatpush1.msra.mxu0 0.0
      %301 = vmatprep.subr.mxu0 0.0
      %302 = vmatpush1.msra.mxu0 0.0
      %303 = vmatprep.subr.mxu0 0.0
      %304 = vmatpush1.msra.mxu0 0.0
      %305 = vmatprep.subr.mxu0 0.0
      %306 = vmatpush1.msra.mxu0 0.0
      %307 = vmatprep.subr.mxu0 0.0
      %308 = vmatpush1.msra.mxu0 0.0
      %309 = vmatprep.subr.mxu0 0.0
      %310 = vmatpush1.msra.mxu0 0.0
      %311 = vmatprep.subr.mxu0 0.0
      %312 = vmatpush1.msra.mxu0 0.0
      %313 = vmatprep.subr.mxu0 0.0
      %314 = vmatpush1.msra.mxu0 0.0
      %315 = vmatprep.subr.mxu0 0.0
      %316 = vmatpush1.msra.mxu0 0.0
      %317 = vmatprep.subr.mxu0 0.0
      %318 = vmatpush1.msra.mxu0 0.0
      %319 = vmatprep.subr.mxu0 0.0
      %320 = vmatpush1.msra.mxu0 0.0
      %321 = vmatprep.subr.mxu0 0.0
      %322 = vmatpush1.msra.mxu0 0.0
      %323 = vmatprep.subr.mxu0 0.0
      %324 = vmatpush1.msra.mxu0 0.0
      %325 = vmatprep.subr.mxu0 0.0
      %326 = vmatpush1.msra.mxu0 0.0
      %327 = vmatprep.subr.mxu0 0.0
      %328 = vmatpush1.msra.mxu0 0.0
      %329 = vmatprep.subr.mxu0 0.0
      %330 = vmatpush1.msra.mxu0 0.0
      %331 = vmatprep.subr.mxu0 0.0
      %332 = vmatpush1.msra.mxu0 0.0
      %333 = vmatprep.subr.mxu0 0.0
      %334 = vmatpush1.msra.mxu0 0.0
      %335 = vmatprep.subr.mxu0 0.0
      %336 = vmatpush1.msra.mxu0 0.0
      %337 = vmatprep.subr.mxu0 0.0
      %338 = vmatpush1.msra.mxu0 0.0
      %339 = vmatprep.subr.mxu0 0.0
      %340 = vmatpush1.msra.mxu0 0.0
      %341 = vmatprep.subr.mxu0 0.0
      %342 = vmatpush1.msra.mxu0 0.0
      %343 = vmatprep.subr.mxu0 0.0
      %344 = vmatpush1.msra.mxu0 0.0
      %345 = vmatprep.subr.mxu0 0.0
      %346 = vmatpush1.msra.mxu0 0.0
      %347 = vmatprep.subr.mxu0 0.0
      %348 = vmatpush1.msra.mxu0 0.0
      %349 = vmatprep.subr.mxu0 0.0
      %350 = vmatpush1.msra.mxu0 0.0
      %351 = vmatprep.subr.mxu0 0.0
      %352 = vmatpush1.msra.mxu0 0.0
      %353 = vmatprep.subr.mxu0 0.0
      %354 = vmatpush1.msra.mxu0 0.0
      %355 = vmatprep.subr.mxu0 0.0
      %356 = vmatpush1.msra.mxu0 0.0
      %357 = vmatprep.mubr.f32.mxu0 0.0
      %358 = vmatmul.mubr.f32.gmra.mrb[0].mxu0 %v291
      %v359 = vpop.f32.mrb[0].mxu0
      %v360 = vadd.f32 0.0, %v359
      %v361 = vpop.f32.mrb[0].mxu0
      %362 = vdwg.mxu0
      %v363 = vld [vmem:[%s4] sm:$0xff]
      %v365 = vsel %vm289, %v363, 0
      %367 = vmatprep.subr.mxu0 0.0
      %368 = vmatpush1.msra.mxu0 %v287
      %369 = vmatprep.subr.mxu0 0.0
      %370 = vmatpush1.msra.mxu0 0.0
      %371 = vmatprep.subr.mxu0 0.0
      %372 = vmatpush1.msra.mxu0 0.0
      %373 = vmatprep.subr.mxu0 0.0
      %374 = vmatpush1.msra.mxu0 0.0
      %375 = vmatprep.subr.mxu0 0.0
      %376 = vmatpush1.msra.mxu0 0.0
      %377 = vmatprep.subr.mxu0 0.0
      %378 = vmatpush1.msra.mxu0 0.0
      %379 = vmatprep.subr.mxu0 0.0
      %380 = vmatpush1.msra.mxu0 0.0
      %381 = vmatprep.subr.mxu0 0.0
      %382 = vmatpush1.msra.mxu0 0.0
      %383 = vmatprep.subr.mxu0 0.0
      %384 = vmatpush1.msra.mxu0 0.0
      %385 = vmatprep.subr.mxu0 0.0
      %386 = vmatpush1.msra.mxu0 0.0
      %387 = vmatprep.subr.mxu0 0.0
      %388 = vmatpush1.msra.mxu0 0.0
      %389 = vmatprep.subr.mxu0 0.0
      %390 = vmatpush1.msra.mxu0 0.0
      %391 = vmatprep.subr.mxu0 0.0
      %392 = vmatpush1.msra.mxu0 0.0
      %393 = vmatprep.subr.mxu0 0.0
      %394 = vmatpush1.msra.mxu0 0.0
      %395 = vmatprep.subr.mxu0 0.0
      %396 = vmatpush1.msra.mxu0 0.0
      %397 = vmatprep.subr.mxu0 0.0
      %398 = vmatpush1.msra.mxu0 0.0
      %399 = vmatprep.subr.mxu0 0.0
      %400 = vmatpush1.msra.mxu0 0.0
      %401 = vmatprep.subr.mxu0 0.0
      %402 = vmatpush1.msra.mxu0 0.0
      %403 = vmatprep.subr.mxu0 0.0
      %404 = vmatpush1.msra.mxu0 0.0
      %405 = vmatprep.subr.mxu0 0.0
      %406 = vmatpush1.msra.mxu0 0.0
      %407 = vmatprep.subr.mxu0 0.0
      %408 = vmatpush1.msra.mxu0 0.0
      %409 = vmatprep.subr.mxu0 0.0
      %410 = vmatpush1.msra.mxu0 0.0
      %411 = vmatprep.subr.mxu0 0.0
      %412 = vmatpush1.msra.mxu0 0.0
      %413 = vmatprep.subr.mxu0 0.0
      %414 = vmatpush1.msra.mxu0 0.0
      %415 = vmatprep.subr.mxu0 0.0
      %416 = vmatpush1.msra.mxu0 0.0
      %417 = vmatprep.subr.mxu0 0.0
      %418 = vmatpush1.msra.mxu0 0.0
      %419 = vmatprep.subr.mxu0 0.0
      %420 = vmatpush1.msra.mxu0 0.0
      %421 = vmatprep.subr.mxu0 0.0
      %422 = vmatpush1.msra.mxu0 0.0
      %423 = vmatprep.subr.mxu0 0.0
      %424 = vmatpush1.msra.mxu0 0.0
      %425 = vmatprep.subr.mxu0 0.0
      %426 = vmatpush1.msra.mxu0 0.0
      %427 = vmatprep.subr.mxu0 0.0
      %428 = vmatpush1.msra.mxu0 0.0
      %429 = vmatprep.subr.mxu0 0.0
      %430 = vmatpush1.msra.mxu0 0.0
      %431 = vmatprep.mubr.f32.mxu0 0.0
      %432 = vmatmul.mubr.f32.gmra.mrb[0].mxu0 %v365
      %v433 = vpop.f32.mrb[0].mxu0
      %v434 = vadd.f32 0.0, %v433
      %v435 = vpop.f32.mrb[0].mxu0
      %436 = vdwg.mxu0
      %v437 = vld [vmem:[%s5] sm:$0xff]
      %v439 = vsel %vm289, %v437, 0
      %441 = vmatprep.subr.mxu0 0.0
      %442 = vmatpush1.msra.mxu0 %v287
      %443 = vmatprep.subr.mxu0 0.0
      %444 = vmatpush1.msra.mxu0 0.0
      %445 = vmatprep.subr.mxu0 0.0
      %446 = vmatpush1.msra.mxu0 0.0
      %447 = vmatprep.subr.mxu0 0.0
      %448 = vmatpush1.msra.mxu0 0.0
      %449 = vmatprep.subr.mxu0 0.0
      %450 = vmatpush1.msra.mxu0 0.0
      %451 = vmatprep.subr.mxu0 0.0
      %452 = vmatpush1.msra.mxu0 0.0
      %453 = vmatprep.subr.mxu0 0.0
      %454 = vmatpush1.msra.mxu0 0.0
      %455 = vmatprep.subr.mxu0 0.0
      %456 = vmatpush1.msra.mxu0 0.0
      %457 = vmatprep.subr.mxu0 0.0
      %458 = vmatpush1.msra.mxu0 0.0
      %459 = vmatprep.subr.mxu0 0.0
      %460 = vmatpush1.msra.mxu0 0.0
      %461 = vmatprep.subr.mxu0 0.0
      %462 = vmatpush1.msra.mxu0 0.0
      %463 = vmatprep.subr.mxu0 0.0
      %464 = vmatpush1.msra.mxu0 0.0
      %465 = vmatprep.subr.mxu0 0.0
      %466 = vmatpush1.msra.mxu0 0.0
      %467 = vmatprep.subr.mxu0 0.0
      %468 = vmatpush1.msra.mxu0 0.0
      %469 = vmatprep.subr.mxu0 0.0
      %470 = vmatpush1.msra.mxu0 0.0
      %471 = vmatprep.subr.mxu0 0.0
      %472 = vmatpush1.msra.mxu0 0.0
      %473 = vmatprep.subr.mxu0 0.0
      %474 = vmatpush1.msra.mxu0 0.0
      %475 = vmatprep.subr.mxu0 0.0
      %476 = vmatpush1.msra.mxu0 0.0
      %477 = vmatprep.subr.mxu0 0.0
      %478 = vmatpush1.msra.mxu0 0.0
      %479 = vmatprep.subr.mxu0 0.0
      %480 = vmatpush1.msra.mxu0 0.0
      %481 = vmatprep.subr.mxu0 0.0
      %482 = vmatpush1.msra.mxu0 0.0
      %483 = vmatprep.subr.mxu0 0.0
      %484 = vmatpush1.msra.mxu0 0.0
      %485 = vmatprep.subr.mxu0 0.0
      %486 = vmatpush1.msra.mxu0 0.0
      %487 = vmatprep.subr.mxu0 0.0
      %488 = vmatpush1.msra.mxu0 0.0
      %489 = vmatprep.subr.mxu0 0.0
      %490 = vmatpush1.msra.mxu0 0.0
      %491 = vmatprep.subr.mxu0 0.0
      %492 = vmatpush1.msra.mxu0 0.0
      %493 = vmatprep.subr.mxu0 0.0
      %494 = vmatpush1.msra.mxu0 0.0
      %495 = vmatprep.subr.mxu0 0.0
      %496 = vmatpush1.msra.mxu0 0.0
      %497 = vmatprep.subr.mxu0 0.0
      %498 = vmatpush1.msra.mxu0 0.0
      %499 = vmatprep.subr.mxu0 0.0
      %500 = vmatpush1.msra.mxu0 0.0
      %501 = vmatprep.subr.mxu0 0.0
      %502 = vmatpush1.msra.mxu0 0.0
      %503 = vmatprep.subr.mxu0 0.0
      %504 = vmatpush1.msra.mxu0 0.0
      %505 = vmatprep.mubr.f32.mxu0 0.0
      %506 = vmatmul.mubr.f32.gmra.mrb[0].mxu0 %v439
      %v507 = vpop.f32.mrb[0].mxu0
      %v508 = vadd.f32 0.0, %v507
      %v509 = vpop.f32.mrb[0].mxu0
      %510 = vdwg.mxu0
      %512 = vrot.lane.b32.xlu0 %v360, 1
      %v513 = vpop.permute.xlu0 %512
      %vm515 = vcmask 7168
      %v516 = vsel %vm515, 0.0, %v513
      %518 = vrot.lane.b32.xlu0 %v508, 127
      %v519 = vpop.permute.xlu0 %518
      %vm521 = vcmask 187392
      %v522 = vsel %vm521, %v519, 0.0
      %v523 = vadd.f32 %v516, %v434
      %v524 = vadd.f32 %v523, %v522
      %vm525 = vcmask 195584
      %526 = vst.msk [vmem:[%s271] sm:$0xff] %vm525, %v524
      %v527 = vsel %vm525, %v524, 0.0
      %528 = vadd.xlane.f32.xlu0 %v527
      %v529 = vpop.xlane.xlu0 %528
      %v530 = vmul.f32 %v524, %v524
      %v531 = vsel %vm525, %v530, 0.0
      %532 = vadd.xlane.f32.xlu0 %v531
      %v533 = vpop.xlane.xlu0 %532
      %v534 = vsel %vm515, %v529, %v533
      %p535 = scmp.eq.s32.totalorder %s19, 0
      // Predicated region
      $region45: #{bottleneck1d.6} parent=43 // pred_check
        %p536 = pneg %p535
      $region46: #{bottleneck1d.6} parent=43 // pred_check_branch
        %538 = sbr.rel (%p536) target = $region48
      $region47: #{bottleneck1d.6} parent=43 // pred_region
        %vm539 = vcmask 15360
        %540 = vst.msk [vmem:[%s7] sm:$0xff] %vm539, 0.0
      $region48: #{bottleneck1d.6} parent=43 // pred_fallthru
        _
      %v541 = vld [vmem:[%s7] sm:$0xff]
      %v542 = vadd.f32 %v541, %v534
      %vm543 = vcmask 15360
      %544 = vst.msk [vmem:[%s7] sm:$0xff] %vm543, %v542
      %p545 = scmp.lt.s32.totalorder %s19, 1
      %s546 = scalar_select %p545, %s19, 1
      %s547 = smul.addr %s546, 8
      %s548 = scalar_lea.vmem %s6, %s547
      // Predicated region
      $region49: #{bottleneck1d.6} parent=43 // pred_check
        %p549 = pneg %p168
      $region50: #{bottleneck1d.6} parent=43 // pred_check_branch
        %551 = sbr.rel (%p549) target = $region52
      $region51: #{bottleneck1d.6} parent=43 // pred_region
        _
      $region52: #{bottleneck1d.6} parent=43 // pred_fallthru
        _
      // Predicated region
      $region53: #{bottleneck1d.6} parent=43 // pred_check
        %p552 = pneg %p189
      $region54: #{bottleneck1d.6} parent=43 // pred_check_branch
        %554 = sbr.rel (%p552) target = $region56
      $region55: #{bottleneck1d.6} parent=43 // pred_region
        _
      $region56: #{bottleneck1d.6} parent=43 // pred_fallthru
        _
      // Predicated region
      $region57: #{bottleneck1d.6} parent=43 // pred_check
        %p555 = pneg %p189
      $region58: #{bottleneck1d.6} parent=43 // pred_check_branch
        %557 = sbr.rel (%p555) target = $region60
      $region59: #{bottleneck1d.6} parent=43 // pred_region
        _
      $region60: #{bottleneck1d.6} parent=43 // pred_fallthru
        _
    $region44: #{bottleneck1d.6} parent=5 // pred_fallthru
      _
    %p558 = scmp.le.s32.totalorder 2, %s14
    // Predicated region
    $region61: #{bottleneck1d.6} parent=5 // pred_check
      %p559 = pneg %p558
    $region62: #{bottleneck1d.6} parent=5 // pred_check_branch
      %561 = sbr.rel (%p559) target = $region64
    $region63: #{bottleneck1d.6} parent=5 // pred_region
      %s562 = ssub.s32 %s14, 2
      // Predicated region
      $region65: #{bottleneck1d.6} parent=63 // pred_check
        %p563 = pneg %p174
      $region66: #{bottleneck1d.6} parent=63 // pred_check_branch
        %565 = sbr.rel (%p563) target = $region68
      $region67: #{bottleneck1d.6} parent=63 // pred_region
        %p566 = scmp.lt.s32.totalorder %s20, 1
        %s567 = scalar_select %p566, %s20, 1
        %s568 = smul.addr %s567, 8
        %s569 = scalar_lea.vmem %s6, %s568
      $region68: #{bottleneck1d.6} parent=63 // pred_fallthru
        _
    $region64: #{bottleneck1d.6} parent=5 // pred_fallthru
      _
  $region6: #{bottleneck1d.6} parent=0 // loop_footer
    %s18 = sadd.s32 1, %s14
  $region7: #{bottleneck1d.6} parent=0 // loop_footer_branch
    %13 = sbr.rel target = $region3
  $region8: #{bottleneck1d.6} parent=0 // loop_exit
    _

// kernel: bottleneck1d.5
$region0: #{bottleneck1d.5}
  #allocation0 [shape = 'u32[]', space=smem, size = 0x4, offset = 0x4, fixed_abs, tag = 'smem constant byte address 0x4 - core index']
  #allocation1 [shape = 'u32[144,128]{1,0:T(1,128)}', space=vmem, size = 0x12000, scoped, tag = 'internal scratch']
  %s0 = inlined_call_operand.vmem [shape: f32[2,16,24], index: 0, kind: input, shape index: {}]
  %s1 = inlined_call_operand.vmem [shape: f32[16,1], index: 1, kind: input, shape index: {}]
  %s2 = inlined_call_operand.vmem [shape: f32[16,1], index: 2, kind: input, shape index: {}]
  %s3 = inlined_call_operand.vmem [shape: f32[8,16], index: 3, kind: input, shape index: {}]
  %s4 = inlined_call_operand.vmem [shape: f32[2,8,24], index: 4, kind: output, shape index: {0}]
  %s5 = inlined_call_operand.vmem [shape: f32[8,2], index: 5, kind: output, shape index: {1}]
  %6 = xla_tuple %s4, %s5
  %s7 = sld [smem:[#allocation0]]
  $region61: #{bottleneck1d.5} parent=0
    _
  %s9 = ssub.s32 1, %s7
  %s10 = scalar_select 0, %s9, %s7
  loop: start=0, step=1, limit=4
  $region2: #{bottleneck1d.5} parent=0 // loop_pre_header
    _
  $region3: #{bottleneck1d.5} parent=0 // loop_header
    %s12 = sphi 0, %s16
    %p13 = scmp.ge.s32.totalorder %s12, 4
    %s22 = sphi 0, %s24
    %s25 = sphi 0, %s22
    %s26 = sphi 0, %s25
    %s42 = sphi 0, %s26
    %s46 = sphi 0, %s46
    %s48 = sphi 0, %s46
    %s49 = sphi 0, %s48
    %s63 = sphi 0, %s49
    %s67 = sphi 0, %s67
    %s69 = sphi 0, %s67
    %s70 = sphi 0, %s69
    %s84 = sphi 0, %s70
    %s88 = sphi 0, %s88
    %s90 = sphi 0, %s88
    %s91 = sphi 0, %s90
    %s105 = sphi 0, %s91
    %s111 = sphi 0, %s113
    %s114 = sphi 0, %s111
    %s115 = sphi 0, %s114
    %s131 = sphi 0, %s115
    %s135 = sphi 0, %s135
    %s137 = sphi 0, %s135
    %s138 = sphi 0, %s137
    %s152 = sphi 0, %s138
  $region4: #{bottleneck1d.5} parent=0 // loop_header_branch
    %15 = sbr.rel (%p13) target = $region8
  $region5: #{bottleneck1d.5} parent=0 // loop_body
    %s17 = ssub.s32 %s12, 1
    %s18 = ssub.s32 %s12, 2
    %s19 = sadd.s32 %s12, 1
    %s20 = ssub.s32 %s12, %s19
    %p21 = scmp.eq.s32.totalorder %s20, 0
    %s23 = sadd.s32 %s22, 1
    %s24 = scalar_select %p21, %s22, %s23
    %p27 = pneg %p21
    %p28 = scmp.eq.s32.totalorder %s12, 1
    %p29 = por %p27, %p28
    %p30 = scmp.ne.s32.totalorder %s22, %s25
    %p31 = scmp.eq.s32.totalorder %s12, 0
    %p32 = por %p30, %p31
    %p33 = scmp.ne.s32.totalorder %s22, %s25
    %p34 = scmp.eq.s32.totalorder %s17, 1
    %p35 = por %p33, %p34
    %p36 = scmp.ne.s32.totalorder %s25, %s26
    %p37 = scmp.eq.s32.totalorder %s17, 0
    %p38 = por %p36, %p37
    %p39 = scmp.ne.s32.totalorder %s25, %s26
    %p40 = scmp.eq.s32.totalorder %s18, 1
    %p41 = por %p39, %p40
    %p43 = scmp.ne.s32.totalorder %s26, %s42
    %p44 = scmp.eq.s32.totalorder %s18, 0
    %p45 = por %p43, %p44
    %s47 = sadd.s32 %s46, 1
    %p50 = scmp.eq.s32.totalorder %s12, 1
    %p51 = scmp.ne.s32.totalorder %s46, %s48
    %p52 = scmp.eq.s32.totalorder %s12, 0
    %p53 = por %p51, %p52
    %p54 = scmp.ne.s32.totalorder %s46, %s48
    %p55 = scmp.eq.s32.totalorder %s17, 1
    %p56 = por %p54, %p55
    %p57 = scmp.ne.s32.totalorder %s48, %s49
    %p58 = scmp.eq.s32.totalorder %s17, 0
    %p59 = por %p57, %p58
    %p60 = scmp.ne.s32.totalorder %s48, %s49
    %p61 = scmp.eq.s32.totalorder %s18, 1
    %p62 = por %p60, %p61
    %p64 = scmp.ne.s32.totalorder %s49, %s63
    %p65 = scmp.eq.s32.totalorder %s18, 0
    %p66 = por %p64, %p65
    %s68 = sadd.s32 %s67, 1
    %p71 = scmp.eq.s32.totalorder %s12, 1
    %p72 = scmp.ne.s32.totalorder %s67, %s69
    %p73 = scmp.eq.s32.totalorder %s12, 0
    %p74 = por %p72, %p73
    %p75 = scmp.ne.s32.totalorder %s67, %s69
    %p76 = scmp.eq.s32.totalorder %s17, 1
    %p77 = por %p75, %p76
    %p78 = scmp.ne.s32.totalorder %s69, %s70
    %p79 = scmp.eq.s32.totalorder %s17, 0
    %p80 = por %p78, %p79
    %p81 = scmp.ne.s32.totalorder %s69, %s70
    %p82 = scmp.eq.s32.totalorder %s18, 1
    %p83 = por %p81, %p82
    %p85 = scmp.ne.s32.totalorder %s70, %s84
    %p86 = scmp.eq.s32.totalorder %s18, 0
    %p87 = por %p85, %p86
    %s89 = sadd.s32 %s88, 1
    %p92 = scmp.eq.s32.totalorder %s12, 1
    %p93 = scmp.ne.s32.totalorder %s88, %s90
    %p94 = scmp.eq.s32.totalorder %s12, 0
    %p95 = por %p93, %p94
    %p96 = scmp.ne.s32.totalorder %s88, %s90
    %p97 = scmp.eq.s32.totalorder %s17, 1
    %p98 = por %p96, %p97
    %p99 = scmp.ne.s32.totalorder %s90, %s91
    %p100 = scmp.eq.s32.totalorder %s17, 0
    %p101 = por %p99, %p100
    %p102 = scmp.ne.s32.totalorder %s90, %s91
    %p103 = scmp.eq.s32.totalorder %s18, 1
    %p104 = por %p102, %p103
    %p106 = scmp.ne.s32.totalorder %s91, %s105
    %p107 = scmp.eq.s32.totalorder %s18, 0
    %p108 = por %p106, %p107
    %s109 = ssub.s32 %s12, %s19
    %p110 = scmp.eq.s32.totalorder %s109, 0
    %s112 = sadd.s32 %s111, 1
    %s113 = scalar_select %p110, %s111, %s112
    %p116 = pneg %p110
    %p117 = scmp.eq.s32.totalorder %s12, 1
    %p118 = por %p116, %p117
    %p119 = scmp.ne.s32.totalorder %s111, %s114
    %p120 = scmp.eq.s32.totalorder %s12, 0
    %p121 = por %p119, %p120
    %p122 = scmp.ne.s32.totalorder %s111, %s114
    %p123 = scmp.eq.s32.totalorder %s17, 1
    %p124 = por %p122, %p123
    %p125 = scmp.ne.s32.totalorder %s114, %s115
    %p126 = scmp.eq.s32.totalorder %s17, 0
    %p127 = por %p125, %p126
    %p128 = scmp.ne.s32.totalorder %s114, %s115
    %p129 = scmp.eq.s32.totalorder %s18, 1
    %p130 = por %p128, %p129
    %p132 = scmp.ne.s32.totalorder %s115, %s131
    %p133 = scmp.eq.s32.totalorder %s18, 0
    %p134 = por %p132, %p133
    %s136 = sadd.s32 %s135, 1
    %p139 = scmp.eq.s32.totalorder %s12, 1
    %p140 = scmp.ne.s32.totalorder %s135, %s137
    %p141 = scmp.eq.s32.totalorder %s12, 0
    %p142 = por %p140, %p141
    %p143 = scmp.ne.s32.totalorder %s135, %s137
    %p144 = scmp.eq.s32.totalorder %s17, 1
    %p145 = por %p143, %p144
    %p146 = scmp.ne.s32.totalorder %s137, %s138
    %p147 = scmp.eq.s32.totalorder %s17, 0
    %p148 = por %p146, %p147
    %p149 = scmp.ne.s32.totalorder %s137, %s138
    %p150 = scmp.eq.s32.totalorder %s18, 1
    %p151 = por %p149, %p150
    %p153 = scmp.ne.s32.totalorder %s138, %s152
    %p154 = scmp.eq.s32.totalorder %s18, 0
    %p155 = por %p153, %p154
    %p156 = scmp.le.s32.totalorder 1, %s12
    %p157 = scmp.lt.s32.totalorder %s12, 3
    %p158 = pnand %p156, %p157
    %p159 = pneg %p158
    // Predicated region
    $region9: #{bottleneck1d.5} parent=5 // pred_check
      _
    $region10: #{bottleneck1d.5} parent=5 // pred_check_branch
      %161 = sbr.rel (%p158) target = $region12
    $region11: #{bottleneck1d.5} parent=5 // pred_region
      %s162 = ssub.s32 %s12, 1
      // Predicated region
      $region13: #{bottleneck1d.5} parent=11 // pred_check
        %p163 = pneg %p59
      $region14: #{bottleneck1d.5} parent=11 // pred_check_branch
        %165 = sbr.rel (%p163) target = $region16
      $region15: #{bottleneck1d.5} parent=11 // pred_region
        _
      $region16: #{bottleneck1d.5} parent=11 // pred_fallthru
        _
      // Predicated region
      $region17: #{bottleneck1d.5} parent=11 // pred_check
        %p166 = pneg %p80
      $region18: #{bottleneck1d.5} parent=11 // pred_check_branch
        %168 = sbr.rel (%p166) target = $region20
      $region19: #{bottleneck1d.5} parent=11 // pred_region
        _
      $region20: #{bottleneck1d.5} parent=11 // pred_fallthru
        _
      // Predicated region
      $region21: #{bottleneck1d.5} parent=11 // pred_check
        %p169 = pneg %p101
      $region22: #{bottleneck1d.5} parent=11 // pred_check_branch
        %171 = sbr.rel (%p169) target = $region24
      $region23: #{bottleneck1d.5} parent=11 // pred_region
        _
      $region24: #{bottleneck1d.5} parent=11 // pred_fallthru
        _
    $region12: #{bottleneck1d.5} parent=5 // pred_fallthru
      _
    %p172 = scmp.lt.s32.totalorder %s12, 2
    // Predicated region
    $region25: #{bottleneck1d.5} parent=5 // pred_check
      %p173 = pneg %p172
    $region26: #{bottleneck1d.5} parent=5 // pred_check_branch
      %175 = sbr.rel (%p173) target = $region28
    $region27: #{bottleneck1d.5} parent=5 // pred_region
      // Predicated region
      $region29: #{bottleneck1d.5} parent=27 // pred_check
        %p176 = pneg %p32
      $region30: #{bottleneck1d.5} parent=27 // pred_check_branch
        %178 = sbr.rel (%p176) target = $region32
      $region31: #{bottleneck1d.5} parent=27 // pred_region
        %p179 = scmp.lt.s32.totalorder %s12, 1
        %s180 = scalar_select %p179, %s12, 1
        %s181 = smul.addr %s180, 2
        %s182 = smul.addr %s181, 8
        %s183 = scalar_lea.vmem %s0, %s182
      $region32: #{bottleneck1d.5} parent=27 // pred_fallthru
        _
    $region28: #{bottleneck1d.5} parent=5 // pred_fallthru
      _
    %p184 = scmp.le.s32.totalorder 1, %s12
    %p185 = scmp.lt.s32.totalorder %s12, 3
    %p186 = pnand %p184, %p185
    %p187 = pneg %p186
    // Predicated region
    $region33: #{bottleneck1d.5} parent=5 // pred_check
      _
    $region34: #{bottleneck1d.5} parent=5 // pred_check_branch
      %189 = sbr.rel (%p186) target = $region36
    $region35: #{bottleneck1d.5} parent=5 // pred_region
      %s190 = ssub.s32 %s12, 1
      %p191 = scmp.lt.s32.totalorder %s17, 1
      %s192 = scalar_select %p191, %s17, 1
      %s193 = smul.addr %s192, 2
      %s194 = smul.addr %s193, 8
      %s195 = scalar_lea.vmem %s0, %s194
      %p196 = pneg %p38
      %p197 = pneg %p35
      %p198 = pneg %p59
      %p199 = pneg %p56
      %p200 = pneg %p80
      %p201 = pneg %p77
      %p202 = pneg %p101
      %p203 = pneg %p98
      %p204 = pneg %p127
      %p205 = pneg %p124
      %p206 = scmp.lt.s32.totalorder %s17, 1
      %s207 = scalar_select %p206, %s17, 1
      %s208 = smul.addr %s207, 8
      %s209 = scalar_lea.vmem %s4, %s208
      %p210 = pneg %p148
      %p211 = pneg %p145
      %p212 = scmp.lt.s32.totalorder %s17, 1
      %s213 = scalar_select %p212, %s17, 1
      %s214 = smul.addr %s213, 2
      %s215 = smul.addr %s214, 8
      %s216 = scalar_lea.vmem %s0, %s215
      %p217 = scmp.lt.s32.totalorder %s17, 1
      %s218 = scalar_select %p217, %s17, 1
      %s219 = smul.addr %s218, 8
      %s220 = scalar_lea.vmem %s4, %s219
      %v221 = vld [vmem:[%s216] sm:$0xff]
      %v222 = vld [vmem:[%s216 + $0x8] sm:$0xff]
      %v223 = vld [vmem:[%s1] sm:$0xff]
      %v224 = vld [vmem:[%s1 + $0x8] sm:$0xff]
      %226 = vset.pattern.permute.xlu0 0
      %227 = vperm.xlu0 %226, %v223
      %v228 = vpop.permute.xlu0 %227
      %231 = vset.pattern.permute.xlu0 0
      %232 = vperm.xlu0 %231, %v224
      %v233 = vpop.permute.xlu0 %232
      %v235 = vmul.f32 %v221, %v228
      %v236 = vmul.f32 %v222, %v233
      %v237 = vld [vmem:[%s2] sm:$0xff]
      %v238 = vld [vmem:[%s2 + $0x8] sm:$0xff]
      %240 = vset.pattern.permute.xlu0 0
      %241 = vperm.xlu0 %240, %v237
      %v242 = vpop.permute.xlu0 %241
      %245 = vset.pattern.permute.xlu0 0
      %246 = vperm.xlu0 %245, %v238
      %v247 = vpop.permute.xlu0 %246
      %v249 = vadd.f32 %v235, %v242
      %v250 = vadd.f32 %v236, %v247
      %v251 = vmax.f32 %v249, 0.0
      %v252 = vmax.f32 %v250, 0.0
      %v253 = vld [vmem:[%s3] sm:$0xff]
      %vm254 = vcmask 130048
      %v256 = vsel %vm254, %v253, 0
      %258 = vmatprep.subr.mxu0 0.0
      %259 = vmatpush1.msra.mxu0 %v251
      %260 = vmatprep.subr.mxu0 0.0
      %261 = vmatpush1.msra.mxu0 %v252
      %262 = vmatprep.subr.mxu0 0.0
      %263 = vmatpush1.msra.mxu0 0.0
      %264 = vmatprep.subr.mxu0 0.0
      %265 = vmatpush1.msra.mxu0 0.0
      %266 = vmatprep.subr.mxu0 0.0
      %267 = vmatpush1.msra.mxu0 0.0
      %268 = vmatprep.subr.mxu0 0.0
      %269 = vmatpush1.msra.mxu0 0.0
      %270 = vmatprep.subr.mxu0 0.0
      %271 = vmatpush1.msra.mxu0 0.0
      %272 = vmatprep.subr.mxu0 0.0
      %273 = vmatpush1.msra.mxu0 0.0
      %274 = vmatprep.subr.mxu0 0.0
      %275 = vmatpush1.msra.mxu0 0.0
      %276 = vmatprep.subr.mxu0 0.0
      %277 = vmatpush1.msra.mxu0 0.0
      %278 = vmatprep.subr.mxu0 0.0
      %279 = vmatpush1.msra.mxu0 0.0
      %280 = vmatprep.subr.mxu0 0.0
      %281 = vmatpush1.msra.mxu0 0.0
      %282 = vmatprep.subr.mxu0 0.0
      %283 = vmatpush1.msra.mxu0 0.0
      %284 = vmatprep.subr.mxu0 0.0
      %285 = vmatpush1.msra.mxu0 0.0
      %286 = vmatprep.subr.mxu0 0.0
      %287 = vmatpush1.msra.mxu0 0.0
      %288 = vmatprep.subr.mxu0 0.0
      %289 = vmatpush1.msra.mxu0 0.0
      %290 = vmatprep.subr.mxu0 0.0
      %291 = vmatpush1.msra.mxu0 0.0
      %292 = vmatprep.subr.mxu0 0.0
      %293 = vmatpush1.msra.mxu0 0.0
      %294 = vmatprep.subr.mxu0 0.0
      %295 = vmatpush1.msra.mxu0 0.0
      %296 = vmatprep.subr.mxu0 0.0
      %297 = vmatpush1.msra.mxu0 0.0
      %298 = vmatprep.subr.mxu0 0.0
      %299 = vmatpush1.msra.mxu0 0.0
      %300 = vmatprep.subr.mxu0 0.0
      %301 = vmatpush1.msra.mxu0 0.0
      %302 = vmatprep.subr.mxu0 0.0
      %303 = vmatpush1.msra.mxu0 0.0
      %304 = vmatprep.subr.mxu0 0.0
      %305 = vmatpush1.msra.mxu0 0.0
      %306 = vmatprep.subr.mxu0 0.0
      %307 = vmatpush1.msra.mxu0 0.0
      %308 = vmatprep.subr.mxu0 0.0
      %309 = vmatpush1.msra.mxu0 0.0
      %310 = vmatprep.subr.mxu0 0.0
      %311 = vmatpush1.msra.mxu0 0.0
      %312 = vmatprep.subr.mxu0 0.0
      %313 = vmatpush1.msra.mxu0 0.0
      %314 = vmatprep.subr.mxu0 0.0
      %315 = vmatpush1.msra.mxu0 0.0
      %316 = vmatprep.subr.mxu0 0.0
      %317 = vmatpush1.msra.mxu0 0.0
      %318 = vmatprep.subr.mxu0 0.0
      %319 = vmatpush1.msra.mxu0 0.0
      %320 = vmatprep.subr.mxu0 0.0
      %321 = vmatpush1.msra.mxu0 0.0
      %322 = vmatprep.mubr.f32.mxu0 0.0
      %323 = vmatmul.mubr.f32.gmra.mrb[0].mxu0 %v256
      %v324 = vpop.f32.mrb[0].mxu0
      %v325 = vadd.f32 0.0, %v324
      %v326 = vpop.f32.mrb[0].mxu0
      %327 = vdwg.mxu0
      %vm328 = vcmask 195584
      %329 = vst.msk [vmem:[%s220] sm:$0xff] %vm328, %v325
      %v330 = vsel %vm328, %v325, 0.0
      %331 = vadd.xlane.f32.xlu0 %v330
      %v332 = vpop.xlane.xlu0 %331
      %v333 = vmul.f32 %v325, %v325
      %v334 = vsel %vm328, %v333, 0.0
      %335 = vadd.xlane.f32.xlu0 %v334
      %v336 = vpop.xlane.xlu0 %335
      %vm337 = vcmask 7168
      %v338 = vsel %vm337, %v332, %v336
      %p339 = scmp.eq.s32.totalorder %s17, 0
      // Predicated region
      $region37: #{bottleneck1d.5} parent=35 // pred_check
        %p340 = pneg %p339
      $region38: #{bottleneck1d.5} parent=35 // pred_check_branch
        %342 = sbr.rel (%p340) target = $region40
      $region39: #{bottleneck1d.5} parent=35 // pred_region
        %vm343 = vcmask 15360
        %344 = vst.msk [vmem:[%s5] sm:$0xff] %vm343, 0.0
      $region40: #{bottleneck1d.5} parent=35 // pred_fallthru
        _
      %v345 = vld [vmem:[%s5] sm:$0xff]
      %v346 = vadd.f32 %v345, %v338
      %vm347 = vcmask 15360
      %348 = vst.msk [vmem:[%s5] sm:$0xff] %vm347, %v346
      %p349 = scmp.lt.s32.totalorder %s17, 1
      %s350 = scalar_select %p349, %s17, 1
      %s351 = smul.addr %s350, 8
      %s352 = scalar_lea.vmem %s4, %s351
      // Predicated region
      $region41: #{bottleneck1d.5} parent=35 // pred_check
        %p353 = pneg %p124
      $region42: #{bottleneck1d.5} parent=35 // pred_check_branch
        %355 = sbr.rel (%p353) target = $region44
      $region43: #{bottleneck1d.5} parent=35 // pred_region
        _
      $region44: #{bottleneck1d.5} parent=35 // pred_fallthru
        _
      // Predicated region
      $region45: #{bottleneck1d.5} parent=35 // pred_check
        %p356 = pneg %p145
      $region46: #{bottleneck1d.5} parent=35 // pred_check_branch
        %358 = sbr.rel (%p356) target = $region48
      $region47: #{bottleneck1d.5} parent=35 // pred_region
        _
      $region48: #{bottleneck1d.5} parent=35 // pred_fallthru
        _
      // Predicated region
      $region49: #{bottleneck1d.5} parent=35 // pred_check
        %p359 = pneg %p145
      $region50: #{bottleneck1d.5} parent=35 // pred_check_branch
        %361 = sbr.rel (%p359) target = $region52
      $region51: #{bottleneck1d.5} parent=35 // pred_region
        _
      $region52: #{bottleneck1d.5} parent=35 // pred_fallthru
        _
    $region36: #{bottleneck1d.5} parent=5 // pred_fallthru
      _
    %p362 = scmp.le.s32.totalorder 2, %s12
    // Predicated region
    $region53: #{bottleneck1d.5} parent=5 // pred_check
      %p363 = pneg %p362
    $region54: #{bottleneck1d.5} parent=5 // pred_check_branch
      %365 = sbr.rel (%p363) target = $region56
    $region55: #{bottleneck1d.5} parent=5 // pred_region
      %s366 = ssub.s32 %s12, 2
      // Predicated region
      $region57: #{bottleneck1d.5} parent=55 // pred_check
        %p367 = pneg %p130
      $region58: #{bottleneck1d.5} parent=55 // pred_check_branch
        %369 = sbr.rel (%p367) target = $region60
      $region59: #{bottleneck1d.5} parent=55 // pred_region
        %p370 = scmp.lt.s32.totalorder %s18, 1
        %s371 = scalar_select %p370, %s18, 1
        %s372 = smul.addr %s371, 8
        %s373 = scalar_lea.vmem %s4, %s372
      $region60: #{bottleneck1d.5} parent=55 // pred_fallthru
        _
    $region56: #{bottleneck1d.5} parent=5 // pred_fallthru
      _
  $region6: #{bottleneck1d.5} parent=0 // loop_footer
    %s16 = sadd.s32 1, %s12
  $region7: #{bottleneck1d.5} parent=0 // loop_footer_branch
    %11 = sbr.rel target = $region3
  $region8: #{bottleneck1d.5} parent=0 // loop_exit
    _

// kernel: bottleneck1d.7
$region0: #{bottleneck1d.7}
  #allocation0 [shape = 'u32[]', space=smem, size = 0x4, offset = 0x4, fixed_abs, tag = 'smem constant byte address 0x4 - core index']
  #allocation1 [shape = 'u32[144,128]{1,0:T(1,128)}', space=vmem, size = 0x12000, scoped, tag = 'internal scratch']
  %s0 = inlined_call_operand.hbm [shape: f32[2,16,24], index: 0, kind: input, shape index: {}, may-alias: {0,6}]
  %s1 = inlined_call_operand.vmem [shape: f32[2,8,24], index: 1, kind: input, shape index: {}]
  %s2 = inlined_call_operand.vmem [shape: f32[8,1], index: 2, kind: input, shape index: {}]
  %s3 = inlined_call_operand.vmem [shape: f32[8,1], index: 3, kind: input, shape index: {}]
  %s4 = inlined_call_operand.vmem [shape: f32[16,8], index: 4, kind: input, shape index: {}]
  %s5 = inlined_call_operand.vmem [shape: f32[16,1], index: 5, kind: input, shape index: {}]
  %s6 = inlined_call_operand.hbm [shape: f32[2,16,24], index: 6, kind: output, shape index: {}, may-alias: {0,6}]
  %s7 = sld [smem:[#allocation0]]
  $region61: #{bottleneck1d.7} parent=0
    _
  %s9 = ssub.s32 1, %s7
  %s10 = scalar_select 0, %s9, %s7
  $region1: #{bottleneck1d.7} parent=0
    #allocation2 [shape = 'u8[16384]{0}', space=vmem, size = 0x4000, scoped, tag = 'input window, operand 0']
    #allocation3 [shape = 's32[2]{0}', space=sflag, size = 0x8, scoped, tag = 'scoped memory for bottleneck1d.7']
    #allocation4 [shape = 's32[2]{0}', space=sflag, size = 0x8, scoped, tag = 'scoped memory for bottleneck1d.7']
    #allocation5 [shape = 'u8[16384]{0}', space=vmem, size = 0x4000, scoped, tag = 'output window, operand 0']
    %11 = vsyncpa [#allocation3], 0
    %s12 = scalar_lea.sflag [#allocation3], 1
    %13 = vsyncpa %s12, 0
    %14 = vsyncpa [#allocation4], 0
    %s15 = scalar_lea.sflag [#allocation4], 1
    %16 = vsyncpa %s15, 0
    loop: start=0, step=1, limit=4
    $region2: #{bottleneck1d.7} parent=1 // loop_pre_header
      _
    $region3: #{bottleneck1d.7} parent=1 // loop_header
      %s18 = sphi 0, %s22
      %p19 = scmp.ge.s32.totalorder %s18, 4
      %s28 = sphi 0, %s30
      %s31 = sphi 0, %s28
      %s32 = sphi 0, %s31
      %s48 = sphi 0, %s32
      %s54 = sphi 0, %s56
      %s57 = sphi 0, %s54
      %s58 = sphi 0, %s57
      %s74 = sphi 0, %s58
      %s78 = sphi 0, %s78
      %s80 = sphi 0, %s78
      %s81 = sphi 0, %s80
      %s95 = sphi 0, %s81
      %s99 = sphi 0, %s99
      %s101 = sphi 0, %s99
      %s102 = sphi 0, %s101
      %s116 = sphi 0, %s102
      %s120 = sphi 0, %s120
      %s122 = sphi 0, %s120
      %s123 = sphi 0, %s122
      %s137 = sphi 0, %s123
      %s141 = sphi 0, %s141
      %s143 = sphi 0, %s141
      %s144 = sphi 0, %s143
      %s158 = sphi 0, %s144
      %s164 = sphi 0, %s166
      %s167 = sphi 0, %s164
      %s168 = sphi 0, %s167
      %s184 = sphi 0, %s168
    $region4: #{bottleneck1d.7} parent=1 // loop_header_branch
      %21 = sbr.rel (%p19) target = $region8
    $region5: #{bottleneck1d.7} parent=1 // loop_body
      %s23 = ssub.s32 %s18, 1
      %s24 = ssub.s32 %s18, 2
      %s25 = sadd.s32 %s18, 1
      %s26 = ssub.s32 %s18, %s25
      %p27 = scmp.eq.s32.totalorder %s26, 0
      %s29 = sadd.s32 %s28, 1
      %s30 = scalar_select %p27, %s28, %s29
      %p33 = pneg %p27
      %p34 = scmp.eq.s32.totalorder %s18, 1
      %p35 = por %p33, %p34
      %p36 = scmp.ne.s32.totalorder %s28, %s31
      %p37 = scmp.eq.s32.totalorder %s18, 0
      %p38 = por %p36, %p37
      %p39 = scmp.ne.s32.totalorder %s28, %s31
      %p40 = scmp.eq.s32.totalorder %s23, 1
      %p41 = por %p39, %p40
      %p42 = scmp.ne.s32.totalorder %s31, %s32
      %p43 = scmp.eq.s32.totalorder %s23, 0
      %p44 = por %p42, %p43
      %p45 = scmp.ne.s32.totalorder %s31, %s32
      %p46 = scmp.eq.s32.totalorder %s24, 1
      %p47 = por %p45, %p46
      %p49 = scmp.ne.s32.totalorder %s32, %s48
      %p50 = scmp.eq.s32.totalorder %s24, 0
      %p51 = por %p49, %p50
      %s52 = ssub.s32 %s18, %s25
      %p53 = scmp.eq.s32.totalorder %s52, 0
      %s55 = sadd.s32 %s54, 1
      %s56 = scalar_select %p53, %s54, %s55
      %p59 = pneg %p53
      %p60 = scmp.eq.s32.totalorder %s18, 1
      %p61 = por %p59, %p60
      %p62 = scmp.ne.s32.totalorder %s54, %s57
      %p63 = scmp.eq.s32.totalorder %s18, 0
      %p64 = por %p62, %p63
      %p65 = scmp.ne.s32.totalorder %s54, %s57
      %p66 = scmp.eq.s32.totalorder %s23, 1
      %p67 = por %p65, %p66
      %p68 = scmp.ne.s32.totalorder %s57, %s58
      %p69 = scmp.eq.s32.totalorder %s23, 0
      %p70 = por %p68, %p69
      %p71 = scmp.ne.s32.totalorder %s57, %s58
      %p72 = scmp.eq.s32.totalorder %s24, 1
      %p73 = por %p71, %p72
      %p75 = scmp.ne.s32.totalorder %s58, %s74
      %p76 = scmp.eq.s32.totalorder %s24, 0
      %p77 = por %p75, %p76
      %s79 = sadd.s32 %s78, 1
      %p82 = scmp.eq.s32.totalorder %s18, 1
      %p83 = scmp.ne.s32.totalorder %s78, %s80
      %p84 = scmp.eq.s32.totalorder %s18, 0
      %p85 = por %p83, %p84
      %p86 = scmp.ne.s32.totalorder %s78, %s80
      %p87 = scmp.eq.s32.totalorder %s23, 1
      %p88 = por %p86, %p87
      %p89 = scmp.ne.s32.totalorder %s80, %s81
      %p90 = scmp.eq.s32.totalorder %s23, 0
      %p91 = por %p89, %p90
      %p92 = scmp.ne.s32.totalorder %s80, %s81
      %p93 = scmp.eq.s32.totalorder %s24, 1
      %p94 = por %p92, %p93
      %p96 = scmp.ne.s32.totalorder %s81, %s95
      %p97 = scmp.eq.s32.totalorder %s24, 0
      %p98 = por %p96, %p97
      %s100 = sadd.s32 %s99, 1
      %p103 = scmp.eq.s32.totalorder %s18, 1
      %p104 = scmp.ne.s32.totalorder %s99, %s101
      %p105 = scmp.eq.s32.totalorder %s18, 0
      %p106 = por %p104, %p105
      %p107 = scmp.ne.s32.totalorder %s99, %s101
      %p108 = scmp.eq.s32.totalorder %s23, 1
      %p109 = por %p107, %p108
      %p110 = scmp.ne.s32.totalorder %s101, %s102
      %p111 = scmp.eq.s32.totalorder %s23, 0
      %p112 = por %p110, %p111
      %p113 = scmp.ne.s32.totalorder %s101, %s102
      %p114 = scmp.eq.s32.totalorder %s24, 1
      %p115 = por %p113, %p114
      %p117 = scmp.ne.s32.totalorder %s102, %s116
      %p118 = scmp.eq.s32.totalorder %s24, 0
      %p119 = por %p117, %p118
      %s121 = sadd.s32 %s120, 1
      %p124 = scmp.eq.s32.totalorder %s18, 1
      %p125 = scmp.ne.s32.totalorder %s120, %s122
      %p126 = scmp.eq.s32.totalorder %s18, 0
      %p127 = por %p125, %p126
      %p128 = scmp.ne.s32.totalorder %s120, %s122
      %p129 = scmp.eq.s32.totalorder %s23, 1
      %p130 = por %p128, %p129
      %p131 = scmp.ne.s32.totalorder %s122, %s123
      %p132 = scmp.eq.s32.totalorder %s23, 0
      %p133 = por %p131, %p132
      %p134 = scmp.ne.s32.totalorder %s122, %s123
      %p135 = scmp.eq.s32.totalorder %s24, 1
      %p136 = por %p134, %p135
      %p138 = scmp.ne.s32.totalorder %s123, %s137
      %p139 = scmp.eq.s32.totalorder %s24, 0
      %p140 = por %p138, %p139
      %s142 = sadd.s32 %s141, 1
      %p145 = scmp.eq.s32.totalorder %s18, 1
      %p146 = scmp.ne.s32.totalorder %s141, %s143
      %p147 = scmp.eq.s32.totalorder %s18, 0
      %p148 = por %p146, %p147
      %p149 = scmp.ne.s32.totalorder %s141, %s143
      %p150 = scmp.eq.s32.totalorder %s23, 1
      %p151 = por %p149, %p150
      %p152 = scmp.ne.s32.totalorder %s143, %s144
      %p153 = scmp.eq.s32.totalorder %s23, 0
      %p154 = por %p152, %p153
      %p155 = scmp.ne.s32.totalorder %s143, %s144
      %p156 = scmp.eq.s32.totalorder %s24, 1
      %p157 = por %p155, %p156
      %p159 = scmp.ne.s32.totalorder %s144, %s158
      %p160 = scmp.eq.s32.totalorder %s24, 0
      %p161 = por %p159, %p160
      %s162 = ssub.s32 %s18, %s25
      %p163 = scmp.eq.s32.totalorder %s162, 0
      %s165 = sadd.s32 %s164, 1
      %s166 = scalar_select %p163, %s164, %s165
      %p169 = pneg %p163
      %p170 = scmp.eq.s32.totalorder %s18, 1
      %p171 = por %p169, %p170
      %p172 = scmp.ne.s32.totalorder %s164, %s167
      %p173 = scmp.eq.s32.totalorder %s18, 0
      %p174 = por %p172, %p173
      %p175 = scmp.ne.s32.totalorder %s164, %s167
      %p176 = scmp.eq.s32.totalorder %s23, 1
      %p177 = por %p175, %p176
      %p178 = scmp.ne.s32.totalorder %s167, %s168
      %p179 = scmp.eq.s32.totalorder %s23, 0
      %p180 = por %p178, %p179
      %p181 = scmp.ne.s32.totalorder %s167, %s168
      %p182 = scmp.eq.s32.totalorder %s24, 1
      %p183 = por %p181, %p182
      %p185 = scmp.ne.s32.totalorder %s168, %s184
      %p186 = scmp.eq.s32.totalorder %s24, 0
      %p187 = por %p185, %p186
      %p188 = scmp.le.s32.totalorder 1, %s18
      %p189 = scmp.lt.s32.totalorder %s18, 3
      %p190 = pnand %p188, %p189
      %p191 = pneg %p190
      // Predicated region
      $region9: #{bottleneck1d.7} parent=5 // pred_check
        _
      $region10: #{bottleneck1d.7} parent=5 // pred_check_branch
        %193 = sbr.rel (%p190) target = $region12
      $region11: #{bottleneck1d.7} parent=5 // pred_region
        %s194 = ssub.s32 %s18, 1
        // Predicated region
        $region13: #{bottleneck1d.7} parent=11 // pred_check
          %p195 = pneg %p91
        $region14: #{bottleneck1d.7} parent=11 // pred_check_branch
          %197 = sbr.rel (%p195) target = $region16
        $region15: #{bottleneck1d.7} parent=11 // pred_region
          _
        $region16: #{bottleneck1d.7} parent=11 // pred_fallthru
          _
        // Predicated region
        $region17: #{bottleneck1d.7} parent=11 // pred_check
          %p198 = pneg %p112
        $region18: #{bottleneck1d.7} parent=11 // pred_check_branch
          %200 = sbr.rel (%p198) target = $region20
        $region19: #{bottleneck1d.7} parent=11 // pred_region
          _
        $region20: #{bottleneck1d.7} parent=11 // pred_fallthru
          _
        // Predicated region
        $region21: #{bottleneck1d.7} parent=11 // pred_check
          %p201 = pneg %p133
        $region22: #{bottleneck1d.7} parent=11 // pred_check_branch
          %203 = sbr.rel (%p201) target = $region24
        $region23: #{bottleneck1d.7} parent=11 // pred_region
          _
        $region24: #{bottleneck1d.7} parent=11 // pred_fallthru
          _
        // Predicated region
        $region25: #{bottleneck1d.7} parent=11 // pred_check
          %p204 = pneg %p154
        $region26: #{bottleneck1d.7} parent=11 // pred_check_branch
          %206 = sbr.rel (%p204) target = $region28
        $region27: #{bottleneck1d.7} parent=11 // pred_region
          _
        $region28: #{bottleneck1d.7} parent=11 // pred_fallthru
          _
      $region12: #{bottleneck1d.7} parent=5 // pred_fallthru
        _
      %p207 = scmp.lt.s32.totalorder %s18, 2
      // Predicated region
      $region29: #{bottleneck1d.7} parent=5 // pred_check
        %p208 = pneg %p207
      $region30: #{bottleneck1d.7} parent=5 // pred_check_branch
        %210 = sbr.rel (%p208) target = $region32
      $region31: #{bottleneck1d.7} parent=5 // pred_region
        // Predicated region
        $region33: #{bottleneck1d.7} parent=31 // pred_check
          %p211 = pneg %p38
        $region34: #{bottleneck1d.7} parent=31 // pred_check_branch
          %213 = sbr.rel (%p211) target = $region36
        $region35: #{bottleneck1d.7} parent=31 // pred_region
          %s214 = sand.u32 %s28, 1
          %s215 = scalar_lea.sflag [#allocation3], %s214
          %s216 = sand.u32 %s28, 1
          %s217 = smul.addr %s216, 16
          %s218 = scalar_lea.vmem [#allocation2], %s217
          %s220 = ssub.s32 256, 256
          %221 = vsyncadd %s215, %s220
          %s222 = smul.addr %s18, 2
          %s223 = smul.addr %s222, 128
          %s224 = scalar_lea.hbm %s0, %s223
          %s225 = sshll.u32 %s218, 4
          %s226 = int_to_ptr.vmem [resolvable:$true] %s225
          %231 = dma.hbm_to_vmem [thread:$0]  %s224, 256, %s226, %s215, 128, 128, 8
        $region36: #{bottleneck1d.7} parent=31 // pred_fallthru
          _
        // Predicated region
        $region37: #{bottleneck1d.7} parent=31 // pred_check
          %p232 = pneg %p64
        $region38: #{bottleneck1d.7} parent=31 // pred_check_branch
          %234 = sbr.rel (%p232) target = $region40
        $region39: #{bottleneck1d.7} parent=31 // pred_region
          %p235 = scmp.lt.s32.totalorder %s18, 1
          %s236 = scalar_select %p235, %s18, 1
          %s237 = smul.addr %s236, 8
          %s238 = scalar_lea.vmem %s1, %s237
        $region40: #{bottleneck1d.7} parent=31 // pred_fallthru
          _
      $region32: #{bottleneck1d.7} parent=5 // pred_fallthru
        _
      %p239 = scmp.le.s32.totalorder 1, %s18
      %p240 = scmp.lt.s32.totalorder %s18, 3
      %p241 = pnand %p239, %p240
      %p242 = pneg %p241
      // Predicated region
      $region41: #{bottleneck1d.7} parent=5 // pred_check
        _
      $region42: #{bottleneck1d.7} parent=5 // pred_check_branch
        %244 = sbr.rel (%p241) target = $region44
      $region43: #{bottleneck1d.7} parent=5 // pred_region
        %s245 = ssub.s32 %s18, 1
        %s246 = sand.u32 %s31, 1
        %s247 = scalar_lea.sflag [#allocation3], %s246
        %s248 = sand.u32 %s31, 1
        %s249 = smul.addr %s248, 16
        %s250 = scalar_lea.vmem [#allocation2], %s249
        // Predicated region
        $region45: #{bottleneck1d.7} parent=43 // pred_check
          %p251 = pneg %p44
        $region46: #{bottleneck1d.7} parent=43 // pred_check_branch
          %253 = sbr.rel (%p251) target = $region48
        $region47: #{bottleneck1d.7} parent=43 // pred_region
          %254 = dma.done %s247, 256
        $region48: #{bottleneck1d.7} parent=43 // pred_fallthru
          _
        %s255 = sand.u32 %s31, 1
        %s256 = scalar_lea.sflag [#allocation3], %s255
        %s257 = sand.u32 %s31, 1
        %s258 = smul.addr %s257, 16
        %s259 = scalar_lea.vmem [#allocation2], %s258
        %p260 = pneg %p44
        %p261 = pneg %p41
        %p262 = scmp.lt.s32.totalorder %s23, 1
        %s263 = scalar_select %p262, %s23, 1
        %s264 = smul.addr %s263, 8
        %s265 = scalar_lea.vmem %s1, %s264
        %p266 = pneg %p70
        %p267 = pneg %p67
        %p268 = pneg %p91
        %p269 = pneg %p88
        %p270 = pneg %p112
        %p271 = pneg %p109
        %p272 = pneg %p133
        %p273 = pneg %p130
        %p274 = pneg %p154
        %p275 = pneg %p151
        %p276 = pneg %p180
        %p277 = pneg %p177
        %s278 = sand.u32 %s167, 1
        %s279 = scalar_lea.sflag [#allocation4], %s278
        %s280 = sand.u32 %s167, 1
        %s281 = smul.addr %s280, 16
        %s282 = scalar_lea.vmem [#allocation5], %s281
        %p283 = scmp.lt.s32.totalorder %s23, 1
        %s284 = scalar_select %p283, %s23, 1
        %s285 = smul.addr %s284, 8
        %s286 = scalar_lea.vmem %s1, %s285
        %v287 = vld [vmem:[%s286] sm:$0xff]
        %v288 = vld [vmem:[%s2] sm:$0xff]
        %290 = vset.pattern.permute.xlu0 0
        %291 = vperm.xlu0 %290, %v288
        %v292 = vpop.permute.xlu0 %291
        %v294 = vmul.f32 %v287, %v292
        %v295 = vld [vmem:[%s3] sm:$0xff]
        %297 = vset.pattern.permute.xlu0 0
        %298 = vperm.xlu0 %297, %v295
        %v299 = vpop.permute.xlu0 %298
        %v301 = vadd.f32 %v294, %v299
        %v302 = vmax.f32 %v301, 0.0
        %v303 = vld [vmem:[%s4] sm:$0xff]
        %v304 = vld [vmem:[%s4 + $0x8] sm:$0xff]
        %vm305 = vcmask 64512
        %v307 = vsel %vm305, %v303, 0
        %v310 = vsel %vm305, %v304, 0
        %312 = vmatprep.subr.mxu0 0.0
        %313 = vmatpush1.msra.mxu0 %v302
        %314 = vmatprep.subr.mxu0 0.0
        %315 = vmatpush1.msra.mxu0 0.0
        %316 = vmatprep.subr.mxu0 0.0
        %317 = vmatpush1.msra.mxu0 0.0
        %318 = vmatprep.subr.mxu0 0.0
        %319 = vmatpush1.msra.mxu0 0.0
        %320 = vmatprep.subr.mxu0 0.0
        %321 = vmatpush1.msra.mxu0 0.0
        %322 = vmatprep.subr.mxu0 0.0
        %323 = vmatpush1.msra.mxu0 0.0
        %324 = vmatprep.subr.mxu0 0.0
        %325 = vmatpush1.msra.mxu0 0.0
        %326 = vmatprep.subr.mxu0 0.0
        %327 = vmatpush1.msra.mxu0 0.0
        %328 = vmatprep.subr.mxu0 0.0
        %329 = vmatpush1.msra.mxu0 0.0
        %330 = vmatprep.subr.mxu0 0.0
        %331 = vmatpush1.msra.mxu0 0.0
        %332 = vmatprep.subr.mxu0 0.0
        %333 = vmatpush1.msra.mxu0 0.0
        %334 = vmatprep.subr.mxu0 0.0
        %335 = vmatpush1.msra.mxu0 0.0
        %336 = vmatprep.subr.mxu0 0.0
        %337 = vmatpush1.msra.mxu0 0.0
        %338 = vmatprep.subr.mxu0 0.0
        %339 = vmatpush1.msra.mxu0 0.0
        %340 = vmatprep.subr.mxu0 0.0
        %341 = vmatpush1.msra.mxu0 0.0
        %342 = vmatprep.subr.mxu0 0.0
        %343 = vmatpush1.msra.mxu0 0.0
        %344 = vmatprep.subr.mxu0 0.0
        %345 = vmatpush1.msra.mxu0 0.0
        %346 = vmatprep.subr.mxu0 0.0
        %347 = vmatpush1.msra.mxu0 0.0
        %348 = vmatprep.subr.mxu0 0.0
        %349 = vmatpush1.msra.mxu0 0.0
        %350 = vmatprep.subr.mxu0 0.0
        %351 = vmatpush1.msra.mxu0 0.0
        %352 = vmatprep.subr.mxu0 0.0
        %353 = vmatpush1.msra.mxu0 0.0
        %354 = vmatprep.subr.mxu0 0.0
        %355 = vmatpush1.msra.mxu0 0.0
        %356 = vmatprep.subr.mxu0 0.0
        %357 = vmatpush1.msra.mxu0 0.0
        %358 = vmatprep.subr.mxu0 0.0
        %359 = vmatpush1.msra.mxu0 0.0
        %360 = vmatprep.subr.mxu0 0.0
        %361 = vmatpush1.msra.mxu0 0.0
        %362 = vmatprep.subr.mxu0 0.0
        %363 = vmatpush1.msra.mxu0 0.0
        %364 = vmatprep.subr.mxu0 0.0
        %365 = vmatpush1.msra.mxu0 0.0
        %366 = vmatprep.subr.mxu0 0.0
        %367 = vmatpush1.msra.mxu0 0.0
        %368 = vmatprep.subr.mxu0 0.0
        %369 = vmatpush1.msra.mxu0 0.0
        %370 = vmatprep.subr.mxu0 0.0
        %371 = vmatpush1.msra.mxu0 0.0
        %372 = vmatprep.subr.mxu0 0.0
        %373 = vmatpush1.msra.mxu0 0.0
        %374 = vmatprep.subr.mxu0 0.0
        %375 = vmatpush1.msra.mxu0 0.0
        %376 = vmatprep.mubr.f32.mxu0 0.0
        %377 = vmatmul.mubr.f32.gmra.mrb[0].mxu0 %v307
        %v378 = vpop.f32.mrb[0].mxu0
        %v379 = vadd.f32 0.0, %v378
        %v380 = vpop.f32.mrb[0].mxu0
        %381 = vmatprep.mubr.f32.mxu0 0.0
        %382 = vmatmul.mubr.f32.gmra.mrb[0].mxu0 %v310
        %v383 = vpop.f32.mrb[0].mxu0
        %v384 = vadd.f32 0.0, %v383
        %v385 = vpop.f32.mrb[0].mxu0
        %386 = vdwg.mxu0
        %v387 = vld [vmem:[%s250] sm:$0xff]
        %v388 = vld [vmem:[%s250 + $0x8] sm:$0xff]
        %v389 = vadd.f32 %v387, %v379
        %v390 = vadd.f32 %v388, %v384
        %v391 = vld [vmem:[%s5] sm:$0xff]
        %v392 = vld [vmem:[%s5 + $0x8] sm:$0xff]
        %394 = vset.pattern.permute.xlu0 0
        %395 = vperm.xlu0 %394, %v391
        %v396 = vpop.permute.xlu0 %395
        %399 = vset.pattern.permute.xlu0 0
        %400 = vperm.xlu0 %399, %v392
        %v401 = vpop.permute.xlu0 %400
        %v403 = vadd.f32 %v389, %v396
        %v404 = vadd.f32 %v390, %v401
        %vm405 = vcmask 195584
        %406 = vst.msk [vmem:[%s282] sm:$0xff] %vm405, %v403
        %407 = vst.msk [vmem:[%s282 + $0x8] sm:$0xff] %vm405, %v404
        %s408 = sand.u32 %s167, 1
        %s409 = scalar_lea.sflag [#allocation4], %s408
        %s410 = sand.u32 %s167, 1
        %s411 = smul.addr %s410, 16
        %s412 = scalar_lea.vmem [#allocation5], %s411
        // Predicated region
        $region49: #{bottleneck1d.7} parent=43 // pred_check
          %p413 = pneg %p177
        $region50: #{bottleneck1d.7} parent=43 // pred_check_branch
          %415 = sbr.rel (%p413) target = $region52
        $region51: #{bottleneck1d.7} parent=43 // pred_region
          %s417 = ssub.s32 256, 256
          %418 = vsyncadd %s409, %s417
          %s419 = smul.addr %s23, 2
          %s420 = smul.addr %s419, 128
          %s421 = scalar_lea.hbm %s6, %s420
          %s422 = sshll.u32 %s412, 4
          %s423 = int_to_ptr.vmem [resolvable:$true] %s422
          %428 = dma.vmem_to_hbm [thread:$0]  %s423, 256, %s421, %s409, 128, 128, 8
        $region52: #{bottleneck1d.7} parent=43 // pred_fallthru
          _
      $region44: #{bottleneck1d.7} parent=5 // pred_fallthru
        _
      %p429 = scmp.le.s32.totalorder 2, %s18
      // Predicated region
      $region53: #{bottleneck1d.7} parent=5 // pred_check
        %p430 = pneg %p429
      $region54: #{bottleneck1d.7} parent=5 // pred_check_branch
        %432 = sbr.rel (%p430) target = $region56
      $region55: #{bottleneck1d.7} parent=5 // pred_region
        %s433 = ssub.s32 %s18, 2
        // Predicated region
        $region57: #{bottleneck1d.7} parent=55 // pred_check
          %p434 = pneg %p183
        $region58: #{bottleneck1d.7} parent=55 // pred_check_branch
          %436 = sbr.rel (%p434) target = $region60
        $region59: #{bottleneck1d.7} parent=55 // pred_region
          %s437 = sand.u32 %s168, 1
          %s438 = scalar_lea.sflag [#allocation4], %s437
          %s439 = sand.u32 %s168, 1
          %s440 = smul.addr %s439, 16
          %s441 = scalar_lea.vmem [#allocation5], %s440
          %442 = dma.done %s438, 256
        $region60: #{bottleneck1d.7} parent=55 // pred_fallthru
          _
      $region56: #{bottleneck1d.7} parent=5 // pred_fallthru
        _
    $region6: #{bottleneck1d.7} parent=1 // loop_footer
      %s22 = sadd.s32 1, %s18
    $region7: #{bottleneck1d.7} parent=1 // loop_footer_branch
      %17 = sbr.rel target = $region3
    $region8: #{bottleneck1d.7} parent=1 // loop_exit
      _
    %443 = vsyncpa [#allocation3], 1
    %s444 = scalar_lea.sflag [#allocation3], 1
    %445 = vsyncpa %s444, 1
    %446 = vsyncpa [#allocation4], 1
    %s447 = scalar_lea.sflag [#allocation4], 1
    %448 = vsyncpa %s447, 1

</llo_original>
